<compile_context>
chip_gen: v7x
topology: tpu7x:2x2x1
jax: 0.10.0
libtpu: 0.0.40
codegen_flags: <defaults>
</compile_context>

<pallas_src>
from functools import partial

import jax
import jax.numpy as jnp
import numpy as np
from jax.experimental import pallas as pl
from jax.experimental.pallas import tpu as pltpu


# ----------------------------------------------------------------------------- helpers
def _erf(z):
    # Abramowitz & Stegun 7.1.26 rational approximation, |err| <= 1.5e-7.
    # PyTorch F.gelu (default) uses exact erf; lax.erf has no guaranteed Mosaic
    # lowering, so we use this polynomial (error far below test tolerance).
    p = 0.3275911
    a1, a2, a3, a4, a5 = 0.254829592, -0.284496736, 1.421413741, -1.453152027, 1.061405429
    za = jnp.abs(z)
    t = 1.0 / (1.0 + p * za)
    poly = ((((a5 * t + a4) * t + a3) * t + a2) * t + a1) * t
    y = 1.0 - poly * jnp.exp(-za * za)
    return jnp.where(z < 0.0, -y, y)


def _gelu_exact(u):
    return 0.5 * u * (1.0 + _erf(u * float(1.0 / np.sqrt(2.0))))


def _layer_math(x, g_attn, wq, wkv, wo, g_ff, w1, b1, w2, b2,
                *, heads, dim_head, compute_dtype):
    """One transformer layer on a single (L, D) sequence.

    Shared verbatim by the Pallas kernel body and the pure-JAX reference so both
    compute identical math. Matmuls run with `compute_dtype` operands and f32
    accumulation; norms/softmax/GELU run in f32.
    """
    f32 = jnp.float32
    cd = compute_dtype
    x = x.astype(f32)
    L, D = x.shape
    hidden = heads * dim_head
    norm_scale = float(D) ** 0.5           # RMSNorm: F.normalize(x, -1) * dim**0.5 * gamma
    attn_scale = float(dim_head) ** -0.5   # Attend: q.shape[-1] ** -0.5

    def rmsnorm(t, gamma):
        ss = jnp.sum(t * t, axis=-1, keepdims=True)
        denom = jnp.maximum(jnp.sqrt(ss), 1e-12)        # F.normalize eps clamp
        return t * (norm_scale / denom) * gamma.astype(f32)

    # --- attention block:  x = to_out(attend(q, k, v)) + x  (all linears bias-free) ---
    h = rmsnorm(x, g_attn).astype(cd)
    q = jnp.dot(h, wq.astype(cd), preferred_element_type=f32)     # (L, hidden)
    kv = jnp.dot(h, wkv.astype(cd), preferred_element_type=f32)   # (L, 2*hidden)
    k, v = kv[:, :hidden], kv[:, hidden:]

    attn_proj = jnp.zeros((L, D), f32)
    for hh in range(heads):                                       # static unroll
        s0 = hh * dim_head
        qh = q[:, s0:s0 + dim_head].astype(cd)
        kh = k[:, s0:s0 + dim_head].astype(cd)
        vh = v[:, s0:s0 + dim_head].astype(cd)
        s = jax.lax.dot_general(qh, kh, (((1,), (1,)), ((), ())),
                                preferred_element_type=f32) * attn_scale   # (L, L)
        s = s - jnp.max(s, axis=-1, keepdims=True)
        e = jnp.exp(s)
        a = (e / jnp.sum(e, axis=-1, keepdims=True)).astype(cd)
        oh = jnp.dot(a, vh, preferred_element_type=f32).astype(cd)         # (L, dh)
        # concat-of-heads @ Wo  ==  sum_h  oh @ Wo[h*dh:(h+1)*dh, :]
        attn_proj = attn_proj + jnp.dot(oh, wo[s0:s0 + dim_head, :].astype(cd),
                                        preferred_element_type=f32)
    x = x + attn_proj

    # --- feedforward block:  x = W2( gelu(gate) * val ) + b2 + x  (GEGLU) ---
    h2 = rmsnorm(x, g_ff).astype(cd)
    u = jnp.dot(h2, w1.astype(cd), preferred_element_type=f32) + b1.astype(f32)  # (L, 2F)
    ff_inner = u.shape[-1] // 2
    val, gate = u[:, :ff_inner], u[:, ff_inner:]        # GEGLU chunk order: (value, gate)
    gg = (_gelu_exact(gate) * val).astype(cd)
    ff = jnp.dot(gg, w2.astype(cd), preferred_element_type=f32) + b2.astype(f32)
    return x + ff


# ----------------------------------------------------------------------------- kernel
def transformer_layer_kernel(x_ref, g1_ref, wq_ref, wkv_ref, wo_ref, g2_ref,
                             w1_ref, b1_ref, w2_ref, b2_ref, o_ref, *,
                             heads, dim_head, compute_dtype):
    y = _layer_math(x_ref[0], g1_ref[...], wq_ref[...], wkv_ref[...], wo_ref[...],
                    g2_ref[...], w1_ref[...], b1_ref[...], w2_ref[...], b2_ref[...],
                    heads=heads, dim_head=dim_head, compute_dtype=compute_dtype)
    o_ref[...] = y[None].astype(o_ref.dtype)


def transformer_layer_forward(x, layer_params, *, heads, dim_head,
                              compute_dtype=jnp.bfloat16):
    """x: (B, L, D). One fused transformer layer (attention block + FF block)."""
    B, L, D = x.shape
    g1, wq, wkv, wo, g2, w1, b1, w2, b2 = layer_params
    assert wq.shape[1] == heads * dim_head

    rep = lambda b: (0, 0)   # replicated (weights reused across the batch grid)
    kern = partial(transformer_layer_kernel, heads=heads, dim_head=dim_head,
                   compute_dtype=compute_dtype)
    return pl.pallas_call(
        kern,
        out_shape=jax.ShapeDtypeStruct((B, L, D), x.dtype),
        grid=(B,),
        in_specs=[
            pl.BlockSpec((1, L, D), lambda b: (b, 0, 0)),   # x, one batch element
            pl.BlockSpec(g1.shape, rep),                    # attn-norm gamma  (1, D)
            pl.BlockSpec(wq.shape, rep),                    # to_q             (D, H*dh)
            pl.BlockSpec(wkv.shape, rep),                   # to_kv            (D, 2*H*dh)
            pl.BlockSpec(wo.shape, rep),                    # to_out           (H*dh, D)
            pl.BlockSpec(g2.shape, rep),                    # ff-norm gamma    (1, D)
            pl.BlockSpec(w1.shape, rep),                    # ff up-proj       (D, 2F)
            pl.BlockSpec(b1.shape, rep),                    # ff up-proj bias  (1, 2F)
            pl.BlockSpec(w2.shape, rep),                    # ff down-proj     (F, D)
            pl.BlockSpec(b2.shape, rep),                    # ff down bias     (1, D)
        ],
        out_specs=pl.BlockSpec((1, L, D), lambda b: (b, 0, 0)),
        compiler_params=pltpu.CompilerParams(
            dimension_semantics=("parallel",),
            vmem_limit_bytes=32 * 1024 * 1024,
        ),
    )(x, g1, wq, wkv, wo, g2, w1, b1, w2, b2)


def transformer_forward(x, params, *, heads, dim_head, compute_dtype=jnp.bfloat16):
    # depth = len(params); final_norm=False -> the final RMSNorm is nn.Identity.
    for layer_params in params:
        x = transformer_layer_forward(x, layer_params, heads=heads, dim_head=dim_head,
                                      compute_dtype=compute_dtype)
    return x


# ----------------------------------------------------------------------------- reference
def transformer_reference(x, params, *, heads, dim_head, compute_dtype=jnp.bfloat16):
    """Pure-JAX reference (same math as the PyTorch module), vmapped over batch."""
    for lp in params:
        def one(xb, lp=lp):
            return _layer_math(xb, *lp, heads=heads, dim_head=dim_head,
                               compute_dtype=compute_dtype)
        x = jax.vmap(one)(x).astype(x.dtype)
    return x


# ----------------------------------------------------------------------------- params
def init_layer_params(key, dim, heads, dim_head, ff_mult, compute_dtype):
    """Weights use the x @ W (in, out) layout, i.e. W = W_pytorch.T for nn.Linear.
    Attention linears are bias-free; FeedForward linears carry biases (PyTorch default)."""
    hidden = heads * dim_head
    ff_inner = int(dim * ff_mult * 2 / 3)
    ks = jax.random.split(key, 9)

    def lin(k, fan_in, fan_out):
        w = jax.random.normal(k, (fan_in, fan_out), jnp.float32) / np.sqrt(fan_in)
        return w.astype(compute_dtype)       # store matmul weights in bf16 (halves DMA)

    g_attn = 1.0 + 0.05 * jax.random.normal(ks[0], (1, dim), jnp.float32)
    wq = lin(ks[1], dim, hidden)
    wkv = lin(ks[2], dim, 2 * hidden)
    wo = lin(ks[3], hidden, dim)
    g_ff = 1.0 + 0.05 * jax.random.normal(ks[4], (1, dim), jnp.float32)
    w1 = lin(ks[5], dim, 2 * ff_inner)
    b1 = 0.02 * jax.random.normal(ks[6], (1, 2 * ff_inner), jnp.float32)
    w2 = lin(ks[7], ff_inner, dim)
    b2 = 0.02 * jax.random.normal(ks[8], (1, dim), jnp.float32)
    return (g_attn, wq, wkv, wo, g_ff, w1, b1, w2, b2)


# ----------------------------------------------------------------------------- main
if __name__ == "__main__":
    # Small Transformer config: dim=128, depth=2, heads=4, dim_head=32 (hidden=128),
    # ff_mult=3 -> ff_inner=256 (all lane-dense), batch=2, seq=16.
    B, L = 2, 16
    dim, depth, heads, dim_head, ff_mult = 128, 2, 4, 32, 3
    compute_dtype = jnp.bfloat16

    key = jax.random.PRNGKey(0)
    kx, *layer_keys = jax.random.split(key, depth + 1)
    x = jax.random.normal(kx, (B, L, dim), dtype=jnp.float32)
    params = [init_layer_params(k, dim, heads, dim_head, ff_mult, compute_dtype)
              for k in layer_keys]

    out = transformer_forward(x, params, heads=heads, dim_head=dim_head,
                              compute_dtype=compute_dtype)
    out = jax.block_until_ready(out)

    ref = transformer_reference(x, params, heads=heads, dim_head=dim_head,
                                compute_dtype=compute_dtype)
    np.testing.assert_allclose(np.asarray(out), np.asarray(ref), rtol=2e-3, atol=2e-3)

    print("KERNEL_OK")
</pallas_src>

<mosaic_0001>
module attributes {stable_mosaic.version = 11 : i64} {
  func.func @transformer_layer_kernel(%arg0: i32, %arg1: memref<1x16x128xf32, #tpu.memory_space<vmem>>, %arg2: memref<1x128xf32, #tpu.memory_space<vmem>>, %arg3: memref<128x128xbf16, #tpu.memory_space<vmem>>, %arg4: memref<128x256xbf16, #tpu.memory_space<vmem>>, %arg5: memref<128x128xbf16, #tpu.memory_space<vmem>>, %arg6: memref<1x128xf32, #tpu.memory_space<vmem>>, %arg7: memref<128x512xbf16, #tpu.memory_space<vmem>>, %arg8: memref<1x512xf32, #tpu.memory_space<vmem>>, %arg9: memref<256x128xbf16, #tpu.memory_space<vmem>>, %arg10: memref<1x128xf32, #tpu.memory_space<vmem>>, %arg11: memref<1x16x128xf32, #tpu.memory_space<vmem>>) attributes {dimension_semantics = [#tpu.dimension_semantics<parallel>], iteration_bounds = array<i64: 2>, scalar_prefetch = 0 : i64, scratch_operands = 0 : i64, tpu.core_type = #tpu.core_type<tc>, window_params = [{transform_indices = @transform_0, window_bounds = array<i64: 1, 16, 128>}, {pipeline_mode = #tpu.pipeline_mode<synchronous>, transform_indices = @transform_1, window_bounds = array<i64: 1, 128>}, {pipeline_mode = #tpu.pipeline_mode<synchronous>, transform_indices = @transform_2, window_bounds = array<i64: 128, 128>}, {pipeline_mode = #tpu.pipeline_mode<synchronous>, transform_indices = @transform_3, window_bounds = array<i64: 128, 256>}, {pipeline_mode = #tpu.pipeline_mode<synchronous>, transform_indices = @transform_4, window_bounds = array<i64: 128, 128>}, {pipeline_mode = #tpu.pipeline_mode<synchronous>, transform_indices = @transform_5, window_bounds = array<i64: 1, 128>}, {pipeline_mode = #tpu.pipeline_mode<synchronous>, transform_indices = @transform_6, window_bounds = array<i64: 128, 512>}, {pipeline_mode = #tpu.pipeline_mode<synchronous>, transform_indices = @transform_7, window_bounds = array<i64: 1, 512>}, {pipeline_mode = #tpu.pipeline_mode<synchronous>, transform_indices = @transform_8, window_bounds = array<i64: 256, 128>}, {pipeline_mode = #tpu.pipeline_mode<synchronous>, transform_indices = @transform_9, window_bounds = array<i64: 1, 128>}, {transform_indices = @transform_10, window_bounds = array<i64: 1, 16, 128>}]} {
    %c0 = arith.constant 0 : index
    %c0_0 = arith.constant 0 : index
    %c0_1 = arith.constant 0 : index
    %0 = vector.load %arg1[%c0, %c0_0, %c0_1] : memref<1x16x128xf32, #tpu.memory_space<vmem>>, vector<1x16x128xf32>
    %1 = vector.shape_cast %0 : vector<1x16x128xf32> to vector<16x128xf32>
    %c0_2 = arith.constant 0 : index
    %c0_3 = arith.constant 0 : index
    %2 = vector.load %arg2[%c0_2, %c0_3] : memref<1x128xf32, #tpu.memory_space<vmem>>, vector<1x128xf32>
    %c0_4 = arith.constant 0 : index
    %c0_5 = arith.constant 0 : index
    %3 = vector.load %arg3[%c0_4, %c0_5] : memref<128x128xbf16, #tpu.memory_space<vmem>>, vector<128x128xbf16>
    %c0_6 = arith.constant 0 : index
    %c0_7 = arith.constant 0 : index
    %4 = vector.load %arg4[%c0_6, %c0_7] : memref<128x256xbf16, #tpu.memory_space<vmem>>, vector<128x256xbf16>
    %c0_8 = arith.constant 0 : index
    %c0_9 = arith.constant 0 : index
    %5 = vector.load %arg5[%c0_8, %c0_9] : memref<128x128xbf16, #tpu.memory_space<vmem>>, vector<128x128xbf16>
    %c0_10 = arith.constant 0 : index
    %c0_11 = arith.constant 0 : index
    %6 = vector.load %arg6[%c0_10, %c0_11] : memref<1x128xf32, #tpu.memory_space<vmem>>, vector<1x128xf32>
    %c0_12 = arith.constant 0 : index
    %c0_13 = arith.constant 0 : index
    %7 = vector.load %arg7[%c0_12, %c0_13] : memref<128x512xbf16, #tpu.memory_space<vmem>>, vector<128x512xbf16>
    %c0_14 = arith.constant 0 : index
    %c0_15 = arith.constant 0 : index
    %8 = vector.load %arg8[%c0_14, %c0_15] : memref<1x512xf32, #tpu.memory_space<vmem>>, vector<1x512xf32>
    %c0_16 = arith.constant 0 : index
    %c0_17 = arith.constant 0 : index
    %9 = vector.load %arg9[%c0_16, %c0_17] : memref<256x128xbf16, #tpu.memory_space<vmem>>, vector<256x128xbf16>
    %c0_18 = arith.constant 0 : index
    %c0_19 = arith.constant 0 : index
    %10 = vector.load %arg10[%c0_18, %c0_19] : memref<1x128xf32, #tpu.memory_space<vmem>>, vector<1x128xf32>
    %11 = arith.mulf %1, %1 : vector<16x128xf32>
    %cst = arith.constant dense<0.000000e+00> : vector<16xf32>
    %12 = vector.multi_reduction <add>, %11, %cst [1] : vector<16x128xf32> to vector<16xf32>
    %13 = vector.shape_cast %12 : vector<16xf32> to vector<16x1xf32>
    %14 = math.sqrt %13 : vector<16x1xf32>
    %cst_20 = arith.constant 9.99999996E-13 : f32
    %15 = vector.broadcast %cst_20 : f32 to vector<16x1xf32>
    %16 = arith.maximumf %14, %15 : vector<16x1xf32>
    %cst_21 = arith.constant 11.3137083 : f32
    %17 = vector.broadcast %cst_21 : f32 to vector<16x1xf32>
    %18 = arith.divf %17, %16 : vector<16x1xf32>
    %19 = vector.broadcast %18 : vector<16x1xf32> to vector<16x128xf32>
    %20 = arith.mulf %1, %19 : vector<16x128xf32>
    %21 = vector.broadcast %2 : vector<1x128xf32> to vector<16x128xf32>
    %22 = arith.mulf %20, %21 : vector<16x128xf32>
    %23 = arith.truncf %22 : vector<16x128xf32> to vector<16x128xbf16>
    %cst_22 = arith.constant dense<0.000000e+00> : vector<16x128xf32>
    %24 = tpu.matmul %23, %3, %cst_22 {dimension_numbers = #tpu.dot_dimension_numbers<[1], [0], [0], [1], [0, 0, 1, 1], [], []>} : vector<16x128xbf16>, vector<128x128xbf16>, vector<16x128xf32> -> vector<16x128xf32>
    %cst_23 = arith.constant dense<0.000000e+00> : vector<16x256xf32>
    %25 = tpu.matmul %23, %4, %cst_23 {dimension_numbers = #tpu.dot_dimension_numbers<[1], [0], [0], [1], [0, 0, 1, 1], [], []>} : vector<16x128xbf16>, vector<128x256xbf16>, vector<16x256xf32> -> vector<16x256xf32>
    %26 = vector.extract_strided_slice %25 {offsets = [0, 0], sizes = [16, 128], strides = [1, 1]} : vector<16x256xf32> to vector<16x128xf32>
    %27 = vector.extract_strided_slice %25 {offsets = [0, 128], sizes = [16, 128], strides = [1, 1]} : vector<16x256xf32> to vector<16x128xf32>
    %cst_24 = arith.constant 0.000000e+00 : f32
    %28 = vector.broadcast %cst_24 : f32 to vector<16x128xf32>
    %29 = vector.extract_strided_slice %24 {offsets = [0, 0], sizes = [16, 32], strides = [1, 1]} : vector<16x128xf32> to vector<16x32xf32>
    %30 = arith.truncf %29 : vector<16x32xf32> to vector<16x32xbf16>
    %31 = vector.extract_strided_slice %26 {offsets = [0, 0], sizes = [16, 32], strides = [1, 1]} : vector<16x128xf32> to vector<16x32xf32>
    %32 = arith.truncf %31 : vector<16x32xf32> to vector<16x32xbf16>
    %33 = vector.extract_strided_slice %27 {offsets = [0, 0], sizes = [16, 32], strides = [1, 1]} : vector<16x128xf32> to vector<16x32xf32>
    %34 = arith.truncf %33 : vector<16x32xf32> to vector<16x32xbf16>
    %cst_25 = arith.constant dense<0.000000e+00> : vector<16x16xf32>
    %35 = tpu.matmul %30, %32, %cst_25 {dimension_numbers = #tpu.dot_dimension_numbers<[1], [1], [0], [0], [0, 0, 1, 0], [], []>} : vector<16x32xbf16>, vector<16x32xbf16>, vector<16x16xf32> -> vector<16x16xf32>
    %cst_26 = arith.constant 0.176776692 : f32
    %36 = vector.broadcast %cst_26 : f32 to vector<16x16xf32>
    %37 = arith.mulf %35, %36 : vector<16x16xf32>
    %cst_27 = arith.constant dense<0xFF800000> : vector<16xf32>
    %38 = vector.multi_reduction <maximumf>, %37, %cst_27 [1] : vector<16x16xf32> to vector<16xf32>
    %39 = vector.shape_cast %38 : vector<16xf32> to vector<16x1xf32>
    %40 = vector.broadcast %39 : vector<16x1xf32> to vector<16x16xf32>
    %41 = arith.subf %37, %40 : vector<16x16xf32>
    %42 = math.exp %41 : vector<16x16xf32>
    %cst_28 = arith.constant dense<0.000000e+00> : vector<16xf32>
    %43 = vector.multi_reduction <add>, %42, %cst_28 [1] : vector<16x16xf32> to vector<16xf32>
    %44 = vector.shape_cast %43 : vector<16xf32> to vector<16x1xf32>
    %45 = vector.broadcast %44 : vector<16x1xf32> to vector<16x16xf32>
    %46 = arith.divf %42, %45 : vector<16x16xf32>
    %47 = arith.truncf %46 : vector<16x16xf32> to vector<16x16xbf16>
    %cst_29 = arith.constant dense<0.000000e+00> : vector<16x32xf32>
    %48 = tpu.matmul %47, %34, %cst_29 {dimension_numbers = #tpu.dot_dimension_numbers<[1], [0], [0], [1], [0, 0, 1, 1], [], []>} : vector<16x16xbf16>, vector<16x32xbf16>, vector<16x32xf32> -> vector<16x32xf32>
    %49 = arith.truncf %48 : vector<16x32xf32> to vector<16x32xbf16>
    %50 = vector.extract_strided_slice %5 {offsets = [0, 0], sizes = [32, 128], strides = [1, 1]} : vector<128x128xbf16> to vector<32x128xbf16>
    %cst_30 = arith.constant dense<0.000000e+00> : vector<16x128xf32>
    %51 = tpu.matmul %49, %50, %cst_30 {dimension_numbers = #tpu.dot_dimension_numbers<[1], [0], [0], [1], [0, 0, 1, 1], [], []>} : vector<16x32xbf16>, vector<32x128xbf16>, vector<16x128xf32> -> vector<16x128xf32>
    %52 = arith.addf %28, %51 : vector<16x128xf32>
    %53 = vector.extract_strided_slice %24 {offsets = [0, 32], sizes = [16, 32], strides = [1, 1]} : vector<16x128xf32> to vector<16x32xf32>
    %54 = arith.truncf %53 : vector<16x32xf32> to vector<16x32xbf16>
    %55 = vector.extract_strided_slice %26 {offsets = [0, 32], sizes = [16, 32], strides = [1, 1]} : vector<16x128xf32> to vector<16x32xf32>
    %56 = arith.truncf %55 : vector<16x32xf32> to vector<16x32xbf16>
    %57 = vector.extract_strided_slice %27 {offsets = [0, 32], sizes = [16, 32], strides = [1, 1]} : vector<16x128xf32> to vector<16x32xf32>
    %58 = arith.truncf %57 : vector<16x32xf32> to vector<16x32xbf16>
    %cst_31 = arith.constant dense<0.000000e+00> : vector<16x16xf32>
    %59 = tpu.matmul %54, %56, %cst_31 {dimension_numbers = #tpu.dot_dimension_numbers<[1], [1], [0], [0], [0, 0, 1, 0], [], []>} : vector<16x32xbf16>, vector<16x32xbf16>, vector<16x16xf32> -> vector<16x16xf32>
    %cst_32 = arith.constant 0.176776692 : f32
    %60 = vector.broadcast %cst_32 : f32 to vector<16x16xf32>
    %61 = arith.mulf %59, %60 : vector<16x16xf32>
    %cst_33 = arith.constant dense<0xFF800000> : vector<16xf32>
    %62 = vector.multi_reduction <maximumf>, %61, %cst_33 [1] : vector<16x16xf32> to vector<16xf32>
    %63 = vector.shape_cast %62 : vector<16xf32> to vector<16x1xf32>
    %64 = vector.broadcast %63 : vector<16x1xf32> to vector<16x16xf32>
    %65 = arith.subf %61, %64 : vector<16x16xf32>
    %66 = math.exp %65 : vector<16x16xf32>
    %cst_34 = arith.constant dense<0.000000e+00> : vector<16xf32>
    %67 = vector.multi_reduction <add>, %66, %cst_34 [1] : vector<16x16xf32> to vector<16xf32>
    %68 = vector.shape_cast %67 : vector<16xf32> to vector<16x1xf32>
    %69 = vector.broadcast %68 : vector<16x1xf32> to vector<16x16xf32>
    %70 = arith.divf %66, %69 : vector<16x16xf32>
    %71 = arith.truncf %70 : vector<16x16xf32> to vector<16x16xbf16>
    %cst_35 = arith.constant dense<0.000000e+00> : vector<16x32xf32>
    %72 = tpu.matmul %71, %58, %cst_35 {dimension_numbers = #tpu.dot_dimension_numbers<[1], [0], [0], [1], [0, 0, 1, 1], [], []>} : vector<16x16xbf16>, vector<16x32xbf16>, vector<16x32xf32> -> vector<16x32xf32>
    %73 = arith.truncf %72 : vector<16x32xf32> to vector<16x32xbf16>
    %74 = vector.extract_strided_slice %5 {offsets = [32, 0], sizes = [32, 128], strides = [1, 1]} : vector<128x128xbf16> to vector<32x128xbf16>
    %cst_36 = arith.constant dense<0.000000e+00> : vector<16x128xf32>
    %75 = tpu.matmul %73, %74, %cst_36 {dimension_numbers = #tpu.dot_dimension_numbers<[1], [0], [0], [1], [0, 0, 1, 1], [], []>} : vector<16x32xbf16>, vector<32x128xbf16>, vector<16x128xf32> -> vector<16x128xf32>
    %76 = arith.addf %52, %75 : vector<16x128xf32>
    %77 = vector.extract_strided_slice %24 {offsets = [0, 64], sizes = [16, 32], strides = [1, 1]} : vector<16x128xf32> to vector<16x32xf32>
    %78 = arith.truncf %77 : vector<16x32xf32> to vector<16x32xbf16>
    %79 = vector.extract_strided_slice %26 {offsets = [0, 64], sizes = [16, 32], strides = [1, 1]} : vector<16x128xf32> to vector<16x32xf32>
    %80 = arith.truncf %79 : vector<16x32xf32> to vector<16x32xbf16>
    %81 = vector.extract_strided_slice %27 {offsets = [0, 64], sizes = [16, 32], strides = [1, 1]} : vector<16x128xf32> to vector<16x32xf32>
    %82 = arith.truncf %81 : vector<16x32xf32> to vector<16x32xbf16>
    %cst_37 = arith.constant dense<0.000000e+00> : vector<16x16xf32>
    %83 = tpu.matmul %78, %80, %cst_37 {dimension_numbers = #tpu.dot_dimension_numbers<[1], [1], [0], [0], [0, 0, 1, 0], [], []>} : vector<16x32xbf16>, vector<16x32xbf16>, vector<16x16xf32> -> vector<16x16xf32>
    %cst_38 = arith.constant 0.176776692 : f32
    %84 = vector.broadcast %cst_38 : f32 to vector<16x16xf32>
    %85 = arith.mulf %83, %84 : vector<16x16xf32>
    %cst_39 = arith.constant dense<0xFF800000> : vector<16xf32>
    %86 = vector.multi_reduction <maximumf>, %85, %cst_39 [1] : vector<16x16xf32> to vector<16xf32>
    %87 = vector.shape_cast %86 : vector<16xf32> to vector<16x1xf32>
    %88 = vector.broadcast %87 : vector<16x1xf32> to vector<16x16xf32>
    %89 = arith.subf %85, %88 : vector<16x16xf32>
    %90 = math.exp %89 : vector<16x16xf32>
    %cst_40 = arith.constant dense<0.000000e+00> : vector<16xf32>
    %91 = vector.multi_reduction <add>, %90, %cst_40 [1] : vector<16x16xf32> to vector<16xf32>
    %92 = vector.shape_cast %91 : vector<16xf32> to vector<16x1xf32>
    %93 = vector.broadcast %92 : vector<16x1xf32> to vector<16x16xf32>
    %94 = arith.divf %90, %93 : vector<16x16xf32>
    %95 = arith.truncf %94 : vector<16x16xf32> to vector<16x16xbf16>
    %cst_41 = arith.constant dense<0.000000e+00> : vector<16x32xf32>
    %96 = tpu.matmul %95, %82, %cst_41 {dimension_numbers = #tpu.dot_dimension_numbers<[1], [0], [0], [1], [0, 0, 1, 1], [], []>} : vector<16x16xbf16>, vector<16x32xbf16>, vector<16x32xf32> -> vector<16x32xf32>
    %97 = arith.truncf %96 : vector<16x32xf32> to vector<16x32xbf16>
    %98 = vector.extract_strided_slice %5 {offsets = [64, 0], sizes = [32, 128], strides = [1, 1]} : vector<128x128xbf16> to vector<32x128xbf16>
    %cst_42 = arith.constant dense<0.000000e+00> : vector<16x128xf32>
    %99 = tpu.matmul %97, %98, %cst_42 {dimension_numbers = #tpu.dot_dimension_numbers<[1], [0], [0], [1], [0, 0, 1, 1], [], []>} : vector<16x32xbf16>, vector<32x128xbf16>, vector<16x128xf32> -> vector<16x128xf32>
    %100 = arith.addf %76, %99 : vector<16x128xf32>
    %101 = vector.extract_strided_slice %24 {offsets = [0, 96], sizes = [16, 32], strides = [1, 1]} : vector<16x128xf32> to vector<16x32xf32>
    %102 = arith.truncf %101 : vector<16x32xf32> to vector<16x32xbf16>
    %103 = vector.extract_strided_slice %26 {offsets = [0, 96], sizes = [16, 32], strides = [1, 1]} : vector<16x128xf32> to vector<16x32xf32>
    %104 = arith.truncf %103 : vector<16x32xf32> to vector<16x32xbf16>
    %105 = vector.extract_strided_slice %27 {offsets = [0, 96], sizes = [16, 32], strides = [1, 1]} : vector<16x128xf32> to vector<16x32xf32>
    %106 = arith.truncf %105 : vector<16x32xf32> to vector<16x32xbf16>
    %cst_43 = arith.constant dense<0.000000e+00> : vector<16x16xf32>
    %107 = tpu.matmul %102, %104, %cst_43 {dimension_numbers = #tpu.dot_dimension_numbers<[1], [1], [0], [0], [0, 0, 1, 0], [], []>} : vector<16x32xbf16>, vector<16x32xbf16>, vector<16x16xf32> -> vector<16x16xf32>
    %cst_44 = arith.constant 0.176776692 : f32
    %108 = vector.broadcast %cst_44 : f32 to vector<16x16xf32>
    %109 = arith.mulf %107, %108 : vector<16x16xf32>
    %cst_45 = arith.constant dense<0xFF800000> : vector<16xf32>
    %110 = vector.multi_reduction <maximumf>, %109, %cst_45 [1] : vector<16x16xf32> to vector<16xf32>
    %111 = vector.shape_cast %110 : vector<16xf32> to vector<16x1xf32>
    %112 = vector.broadcast %111 : vector<16x1xf32> to vector<16x16xf32>
    %113 = arith.subf %109, %112 : vector<16x16xf32>
    %114 = math.exp %113 : vector<16x16xf32>
    %cst_46 = arith.constant dense<0.000000e+00> : vector<16xf32>
    %115 = vector.multi_reduction <add>, %114, %cst_46 [1] : vector<16x16xf32> to vector<16xf32>
    %116 = vector.shape_cast %115 : vector<16xf32> to vector<16x1xf32>
    %117 = vector.broadcast %116 : vector<16x1xf32> to vector<16x16xf32>
    %118 = arith.divf %114, %117 : vector<16x16xf32>
    %119 = arith.truncf %118 : vector<16x16xf32> to vector<16x16xbf16>
    %cst_47 = arith.constant dense<0.000000e+00> : vector<16x32xf32>
    %120 = tpu.matmul %119, %106, %cst_47 {dimension_numbers = #tpu.dot_dimension_numbers<[1], [0], [0], [1], [0, 0, 1, 1], [], []>} : vector<16x16xbf16>, vector<16x32xbf16>, vector<16x32xf32> -> vector<16x32xf32>
    %121 = arith.truncf %120 : vector<16x32xf32> to vector<16x32xbf16>
    %122 = vector.extract_strided_slice %5 {offsets = [96, 0], sizes = [32, 128], strides = [1, 1]} : vector<128x128xbf16> to vector<32x128xbf16>
    %cst_48 = arith.constant dense<0.000000e+00> : vector<16x128xf32>
    %123 = tpu.matmul %121, %122, %cst_48 {dimension_numbers = #tpu.dot_dimension_numbers<[1], [0], [0], [1], [0, 0, 1, 1], [], []>} : vector<16x32xbf16>, vector<32x128xbf16>, vector<16x128xf32> -> vector<16x128xf32>
    %124 = arith.addf %100, %123 : vector<16x128xf32>
    %125 = arith.addf %1, %124 : vector<16x128xf32>
    %126 = arith.mulf %125, %125 : vector<16x128xf32>
    %cst_49 = arith.constant dense<0.000000e+00> : vector<16xf32>
    %127 = vector.multi_reduction <add>, %126, %cst_49 [1] : vector<16x128xf32> to vector<16xf32>
    %128 = vector.shape_cast %127 : vector<16xf32> to vector<16x1xf32>
    %129 = math.sqrt %128 : vector<16x1xf32>
    %cst_50 = arith.constant 9.99999996E-13 : f32
    %130 = vector.broadcast %cst_50 : f32 to vector<16x1xf32>
    %131 = arith.maximumf %129, %130 : vector<16x1xf32>
    %cst_51 = arith.constant 11.3137083 : f32
    %132 = vector.broadcast %cst_51 : f32 to vector<16x1xf32>
    %133 = arith.divf %132, %131 : vector<16x1xf32>
    %134 = vector.broadcast %133 : vector<16x1xf32> to vector<16x128xf32>
    %135 = arith.mulf %125, %134 : vector<16x128xf32>
    %136 = vector.broadcast %6 : vector<1x128xf32> to vector<16x128xf32>
    %137 = arith.mulf %135, %136 : vector<16x128xf32>
    %138 = arith.truncf %137 : vector<16x128xf32> to vector<16x128xbf16>
    %cst_52 = arith.constant dense<0.000000e+00> : vector<16x512xf32>
    %139 = tpu.matmul %138, %7, %cst_52 {dimension_numbers = #tpu.dot_dimension_numbers<[1], [0], [0], [1], [0, 0, 1, 1], [], []>} : vector<16x128xbf16>, vector<128x512xbf16>, vector<16x512xf32> -> vector<16x512xf32>
    %140 = vector.broadcast %8 : vector<1x512xf32> to vector<16x512xf32>
    %141 = arith.addf %139, %140 : vector<16x512xf32>
    %142 = vector.extract_strided_slice %141 {offsets = [0, 0], sizes = [16, 256], strides = [1, 1]} : vector<16x512xf32> to vector<16x256xf32>
    %143 = vector.extract_strided_slice %141 {offsets = [0, 256], sizes = [16, 256], strides = [1, 1]} : vector<16x512xf32> to vector<16x256xf32>
    %cst_53 = arith.constant 5.000000e-01 : f32
    %144 = vector.broadcast %cst_53 : f32 to vector<16x256xf32>
    %145 = arith.mulf %144, %143 : vector<16x256xf32>
    %cst_54 = arith.constant 0.707106769 : f32
    %146 = vector.broadcast %cst_54 : f32 to vector<16x256xf32>
    %147 = arith.mulf %143, %146 : vector<16x256xf32>
    %148 = math.absf %147 : vector<16x256xf32>
    %cst_55 = arith.constant 0.327591091 : f32
    %149 = vector.broadcast %cst_55 : f32 to vector<16x256xf32>
    %150 = arith.mulf %149, %148 : vector<16x256xf32>
    %cst_56 = arith.constant 1.000000e+00 : f32
    %151 = vector.broadcast %cst_56 : f32 to vector<16x256xf32>
    %152 = arith.addf %151, %150 : vector<16x256xf32>
    %cst_57 = arith.constant 1.000000e+00 : f32
    %153 = vector.broadcast %cst_57 : f32 to vector<16x256xf32>
    %154 = arith.divf %153, %152 : vector<16x256xf32>
    %cst_58 = arith.constant 1.06140542 : f32
    %155 = vector.broadcast %cst_58 : f32 to vector<16x256xf32>
    %156 = arith.mulf %155, %154 : vector<16x256xf32>
    %cst_59 = arith.constant -1.45315206 : f32
    %157 = vector.broadcast %cst_59 : f32 to vector<16x256xf32>
    %158 = arith.addf %156, %157 : vector<16x256xf32>
    %159 = arith.mulf %158, %154 : vector<16x256xf32>
    %cst_60 = arith.constant 1.42141378 : f32
    %160 = vector.broadcast %cst_60 : f32 to vector<16x256xf32>
    %161 = arith.addf %159, %160 : vector<16x256xf32>
    %162 = arith.mulf %161, %154 : vector<16x256xf32>
    %cst_61 = arith.constant -0.284496725 : f32
    %163 = vector.broadcast %cst_61 : f32 to vector<16x256xf32>
    %164 = arith.addf %162, %163 : vector<16x256xf32>
    %165 = arith.mulf %164, %154 : vector<16x256xf32>
    %cst_62 = arith.constant 0.254829586 : f32
    %166 = vector.broadcast %cst_62 : f32 to vector<16x256xf32>
    %167 = arith.addf %165, %166 : vector<16x256xf32>
    %168 = arith.mulf %167, %154 : vector<16x256xf32>
    %cst_63 = arith.constant 0.000000e+00 : f32
    %169 = vector.broadcast %cst_63 : f32 to vector<16x256xf32>
    %170 = arith.subf %169, %148 : vector<16x256xf32>
    %171 = arith.mulf %170, %148 : vector<16x256xf32>
    %172 = math.exp %171 : vector<16x256xf32>
    %173 = arith.mulf %168, %172 : vector<16x256xf32>
    %cst_64 = arith.constant 1.000000e+00 : f32
    %174 = vector.broadcast %cst_64 : f32 to vector<16x256xf32>
    %175 = arith.subf %174, %173 : vector<16x256xf32>
    %cst_65 = arith.constant 0.000000e+00 : f32
    %176 = vector.broadcast %cst_65 : f32 to vector<16x256xf32>
    %177 = arith.cmpf olt, %147, %176 : vector<16x256xf32>
    %cst_66 = arith.constant 0.000000e+00 : f32
    %178 = vector.broadcast %cst_66 : f32 to vector<16x256xf32>
    %179 = arith.subf %178, %175 : vector<16x256xf32>
    %180 = arith.select %177, %179, %175 : vector<16x256xi1>, vector<16x256xf32>
    %cst_67 = arith.constant 1.000000e+00 : f32
    %181 = vector.broadcast %cst_67 : f32 to vector<16x256xf32>
    %182 = arith.addf %181, %180 : vector<16x256xf32>
    %183 = arith.mulf %145, %182 : vector<16x256xf32>
    %184 = arith.mulf %183, %142 : vector<16x256xf32>
    %185 = arith.truncf %184 : vector<16x256xf32> to vector<16x256xbf16>
    %cst_68 = arith.constant dense<0.000000e+00> : vector<16x128xf32>
    %186 = tpu.matmul %185, %9, %cst_68 {dimension_numbers = #tpu.dot_dimension_numbers<[1], [0], [0], [1], [0, 0, 1, 1], [], []>} : vector<16x256xbf16>, vector<256x128xbf16>, vector<16x128xf32> -> vector<16x128xf32>
    %187 = vector.broadcast %10 : vector<1x128xf32> to vector<16x128xf32>
    %188 = arith.addf %186, %187 : vector<16x128xf32>
    %189 = arith.addf %125, %188 : vector<16x128xf32>
    %190 = vector.shape_cast %189 : vector<16x128xf32> to vector<1x16x128xf32>
    %c0_69 = arith.constant 0 : index
    %c0_70 = arith.constant 0 : index
    %c0_71 = arith.constant 0 : index
    %191 = vector.load %arg11[%c0_69, %c0_70, %c0_71] : memref<1x16x128xf32, #tpu.memory_space<vmem>>, vector<1x16x128xf32>
    tpu.vector_store %arg11[%c0_69, %c0_70, %c0_71], %190 {strides = array<i32>} : memref<1x16x128xf32, #tpu.memory_space<vmem>>, vector<1x16x128xf32>,
    return
  }
  func.func @transform_0(%arg0: i32) -> (i32, i32, i32) {
    %c0_i32 = arith.constant 0 : i32
    %c0_i32_0 = arith.constant 0 : i32
    %c0_i32_1 = arith.constant 0 : i32
    return %arg0, %c0_i32, %c0_i32_0 : i32, i32, i32
  }
  func.func @transform_1(%arg0: i32) -> (i32, i32) {
    %c0_i32 = arith.constant 0 : i32
    %c0_i32_0 = arith.constant 0 : i32
    %c0_i32_1 = arith.constant 0 : i32
    return %c0_i32, %c0_i32_0 : i32, i32
  }
  func.func @transform_2(%arg0: i32) -> (i32, i32) {
    %c0_i32 = arith.constant 0 : i32
    %c0_i32_0 = arith.constant 0 : i32
    %c0_i32_1 = arith.constant 0 : i32
    return %c0_i32, %c0_i32_0 : i32, i32
  }
  func.func @transform_3(%arg0: i32) -> (i32, i32) {
    %c0_i32 = arith.constant 0 : i32
    %c0_i32_0 = arith.constant 0 : i32
    %c0_i32_1 = arith.constant 0 : i32
    return %c0_i32, %c0_i32_0 : i32, i32
  }
  func.func @transform_4(%arg0: i32) -> (i32, i32) {
    %c0_i32 = arith.constant 0 : i32
    %c0_i32_0 = arith.constant 0 : i32
    %c0_i32_1 = arith.constant 0 : i32
    return %c0_i32, %c0_i32_0 : i32, i32
  }
  func.func @transform_5(%arg0: i32) -> (i32, i32) {
    %c0_i32 = arith.constant 0 : i32
    %c0_i32_0 = arith.constant 0 : i32
    %c0_i32_1 = arith.constant 0 : i32
    return %c0_i32, %c0_i32_0 : i32, i32
  }
  func.func @transform_6(%arg0: i32) -> (i32, i32) {
    %c0_i32 = arith.constant 0 : i32
    %c0_i32_0 = arith.constant 0 : i32
    %c0_i32_1 = arith.constant 0 : i32
    return %c0_i32, %c0_i32_0 : i32, i32
  }
  func.func @transform_7(%arg0: i32) -> (i32, i32) {
    %c0_i32 = arith.constant 0 : i32
    %c0_i32_0 = arith.constant 0 : i32
    %c0_i32_1 = arith.constant 0 : i32
    return %c0_i32, %c0_i32_0 : i32, i32
  }
  func.func @transform_8(%arg0: i32) -> (i32, i32) {
    %c0_i32 = arith.constant 0 : i32
    %c0_i32_0 = arith.constant 0 : i32
    %c0_i32_1 = arith.constant 0 : i32
    return %c0_i32, %c0_i32_0 : i32, i32
  }
  func.func @transform_9(%arg0: i32) -> (i32, i32) {
    %c0_i32 = arith.constant 0 : i32
    %c0_i32_0 = arith.constant 0 : i32
    %c0_i32_1 = arith.constant 0 : i32
    return %c0_i32, %c0_i32_0 : i32, i32
  }
  func.func @transform_10(%arg0: i32) -> (i32, i32, i32) {
    %c0_i32 = arith.constant 0 : i32
    %c0_i32_0 = arith.constant 0 : i32
    %c0_i32_1 = arith.constant 0 : i32
    return %arg0, %c0_i32, %c0_i32_0 : i32, i32, i32
  }
}

</mosaic_0001>

<llo_original>
// kernel: tpu_custom_call.1
$region0: #{tpu_custom_call.1}
  #allocation0 [shape = 'u32[]', space=smem, size = 0x4, offset = 0x4, fixed_abs, tag = 'smem constant byte address 0x4 - core index']
  #allocation1 [shape = 'u32[144,128]{1,0:T(1,128)}', space=vmem, size = 0x12000, scoped, tag = 'internal scratch']
  %s0 = inlined_call_operand.hbm [shape: f32[2,16,128], index: 0, kind: input, shape index: {}]
  %s1 = inlined_call_operand.vmem [shape: f32[1,128], index: 1, kind: input, shape index: {}]
  %s2 = inlined_call_operand.hbm [shape: bf16[128,128], index: 2, kind: input, shape index: {}]
  %s3 = inlined_call_operand.hbm [shape: bf16[128,256], index: 3, kind: input, shape index: {}]
  %s4 = inlined_call_operand.hbm [shape: bf16[128,128], index: 4, kind: input, shape index: {}]
  %s5 = inlined_call_operand.vmem [shape: f32[1,128], index: 5, kind: input, shape index: {}]
  %s6 = inlined_call_operand.hbm [shape: bf16[128,512], index: 6, kind: input, shape index: {}]
  %s7 = inlined_call_operand.vmem [shape: f32[1,512], index: 7, kind: input, shape index: {}]
  %s8 = inlined_call_operand.hbm [shape: bf16[256,128], index: 8, kind: input, shape index: {}]
  %s9 = inlined_call_operand.vmem [shape: f32[1,128], index: 9, kind: input, shape index: {}]
  %s10 = inlined_call_operand.hbm [shape: f32[2,16,128], index: 10, kind: output, shape index: {}]
  %s11 = sld [smem:[#allocation0]]
  $region97: #{tpu_custom_call.1} parent=0
    _
  %s13 = ssub.s32 1, %s11
  %s14 = scalar_select 0, %s13, %s11
  $region1: #{tpu_custom_call.1} parent=0
    #allocation2 [shape = 'u8[16384]{0}', space=vmem, size = 0x4000, scoped, tag = 'input window, operand 0']
    #allocation3 [shape = 's32[2]{0}', space=sflag, size = 0x8, scoped, tag = 'scoped memory for tpu_custom_call.1']
    #allocation4 [shape = 's32[2]{0}', space=sflag, size = 0x8, scoped, tag = 'scoped memory for tpu_custom_call.1']
    #allocation5 [shape = 'u8[32768]{0}', space=vmem, size = 0x8000, scoped, tag = 'input window, operand 2, single buffered']
    #allocation6 [shape = 's32[1]{0}', space=sflag, size = 0x4, scoped, tag = 'scoped memory for tpu_custom_call.1']
    #allocation7 [shape = 'u8[65536]{0}', space=vmem, size = 0x10000, scoped, tag = 'input window, operand 3, single buffered']
    #allocation8 [shape = 'u8[32768]{0}', space=vmem, size = 0x8000, scoped, tag = 'input window, operand 4, single buffered']
    #allocation9 [shape = 's32[1]{0}', space=sflag, size = 0x4, scoped, tag = 'scoped memory for tpu_custom_call.1']
    #allocation10 [shape = 'u8[131072]{0}', space=vmem, size = 0x20000, scoped, tag = 'input window, operand 6, single buffered']
    #allocation11 [shape = 'u8[65536]{0}', space=vmem, size = 0x10000, scoped, tag = 'input window, operand 8, single buffered']
    #allocation12 [shape = 's32[1]{0}', space=sflag, size = 0x4, scoped, tag = 'scoped memory for tpu_custom_call.1']
    #allocation13 [shape = 'u8[16384]{0}', space=vmem, size = 0x4000, scoped, tag = 'output window, operand 0']
    %15 = vsyncpa [#allocation3], 0
    %s16 = scalar_lea.sflag [#allocation3], 1
    %17 = vsyncpa %s16, 0
    %18 = vsyncpa [#allocation6], 0
    %19 = vsyncpa [#allocation9], 0
    %20 = vsyncpa [#allocation12], 0
    %21 = vsyncpa [#allocation4], 0
    %s22 = scalar_lea.sflag [#allocation4], 1
    %23 = vsyncpa %s22, 0
    loop: start=0, step=1, limit=4
    $region2: #{tpu_custom_call.1} parent=1 // loop_pre_header
      _
    $region3: #{tpu_custom_call.1} parent=1 // loop_header
      %s25 = sphi 0, %s29
      %p26 = scmp.ge.s32.totalorder %s25, 4
      %s35 = sphi 0, %s37
      %s38 = sphi 0, %s35
      %s39 = sphi 0, %s38
      %s55 = sphi 0, %s39
      %s59 = sphi 0, %s59
      %s61 = sphi 0, %s59
      %s62 = sphi 0, %s61
      %s76 = sphi 0, %s62
      %s80 = sphi 0, %s80
      %s82 = sphi 0, %s80
      %s83 = sphi 0, %s82
      %s97 = sphi 0, %s83
      %s101 = sphi 0, %s101
      %s103 = sphi 0, %s101
      %s104 = sphi 0, %s103
      %s118 = sphi 0, %s104
      %s122 = sphi 0, %s122
      %s124 = sphi 0, %s122
      %s125 = sphi 0, %s124
      %s139 = sphi 0, %s125
      %s143 = sphi 0, %s143
      %s145 = sphi 0, %s143
      %s146 = sphi 0, %s145
      %s160 = sphi 0, %s146
      %s164 = sphi 0, %s164
      %s166 = sphi 0, %s164
      %s167 = sphi 0, %s166
      %s181 = sphi 0, %s167
      %s185 = sphi 0, %s185
      %s187 = sphi 0, %s185
      %s188 = sphi 0, %s187
      %s202 = sphi 0, %s188
      %s206 = sphi 0, %s206
      %s208 = sphi 0, %s206
      %s209 = sphi 0, %s208
      %s223 = sphi 0, %s209
      %s227 = sphi 0, %s227
      %s229 = sphi 0, %s227
      %s230 = sphi 0, %s229
      %s244 = sphi 0, %s230
      %s250 = sphi 0, %s252
      %s253 = sphi 0, %s250
      %s254 = sphi 0, %s253
      %s270 = sphi 0, %s254
    $region4: #{tpu_custom_call.1} parent=1 // loop_header_branch
      %28 = sbr.rel (%p26) target = $region8
    $region5: #{tpu_custom_call.1} parent=1 // loop_body
      %s30 = ssub.s32 %s25, 1
      %s31 = ssub.s32 %s25, 2
      %s32 = sadd.s32 %s25, 1
      %s33 = ssub.s32 %s25, %s32
      %p34 = scmp.eq.s32.totalorder %s33, 0
      %s36 = sadd.s32 %s35, 1
      %s37 = scalar_select %p34, %s35, %s36
      %p40 = pneg %p34
      %p41 = scmp.eq.s32.totalorder %s25, 1
      %p42 = por %p40, %p41
      %p43 = scmp.ne.s32.totalorder %s35, %s38
      %p44 = scmp.eq.s32.totalorder %s25, 0
      %p45 = por %p43, %p44
      %p46 = scmp.ne.s32.totalorder %s35, %s38
      %p47 = scmp.eq.s32.totalorder %s30, 1
      %p48 = por %p46, %p47
      %p49 = scmp.ne.s32.totalorder %s38, %s39
      %p50 = scmp.eq.s32.totalorder %s30, 0
      %p51 = por %p49, %p50
      %p52 = scmp.ne.s32.totalorder %s38, %s39
      %p53 = scmp.eq.s32.totalorder %s31, 1
      %p54 = por %p52, %p53
      %p56 = scmp.ne.s32.totalorder %s39, %s55
      %p57 = scmp.eq.s32.totalorder %s31, 0
      %p58 = por %p56, %p57
      %s60 = sadd.s32 %s59, 1
      %p63 = scmp.eq.s32.totalorder %s25, 1
      %p64 = scmp.ne.s32.totalorder %s59, %s61
      %p65 = scmp.eq.s32.totalorder %s25, 0
      %p66 = por %p64, %p65
      %p67 = scmp.ne.s32.totalorder %s59, %s61
      %p68 = scmp.eq.s32.totalorder %s30, 1
      %p69 = por %p67, %p68
      %p70 = scmp.ne.s32.totalorder %s61, %s62
      %p71 = scmp.eq.s32.totalorder %s30, 0
      %p72 = por %p70, %p71
      %p73 = scmp.ne.s32.totalorder %s61, %s62
      %p74 = scmp.eq.s32.totalorder %s31, 1
      %p75 = por %p73, %p74
      %p77 = scmp.ne.s32.totalorder %s62, %s76
      %p78 = scmp.eq.s32.totalorder %s31, 0
      %p79 = por %p77, %p78
      %s81 = sadd.s32 %s80, 1
      %p84 = scmp.eq.s32.totalorder %s25, 1
      %p85 = scmp.ne.s32.totalorder %s80, %s82
      %p86 = scmp.eq.s32.totalorder %s25, 0
      %p87 = por %p85, %p86
      %p88 = scmp.ne.s32.totalorder %s80, %s82
      %p89 = scmp.eq.s32.totalorder %s30, 1
      %p90 = por %p88, %p89
      %p91 = scmp.ne.s32.totalorder %s82, %s83
      %p92 = scmp.eq.s32.totalorder %s30, 0
      %p93 = por %p91, %p92
      %p94 = scmp.ne.s32.totalorder %s82, %s83
      %p95 = scmp.eq.s32.totalorder %s31, 1
      %p96 = por %p94, %p95
      %p98 = scmp.ne.s32.totalorder %s83, %s97
      %p99 = scmp.eq.s32.totalorder %s31, 0
      %p100 = por %p98, %p99
      %s102 = sadd.s32 %s101, 1
      %p105 = scmp.eq.s32.totalorder %s25, 1
      %p106 = scmp.ne.s32.totalorder %s101, %s103
      %p107 = scmp.eq.s32.totalorder %s25, 0
      %p108 = por %p106, %p107
      %p109 = scmp.ne.s32.totalorder %s101, %s103
      %p110 = scmp.eq.s32.totalorder %s30, 1
      %p111 = por %p109, %p110
      %p112 = scmp.ne.s32.totalorder %s103, %s104
      %p113 = scmp.eq.s32.totalorder %s30, 0
      %p114 = por %p112, %p113
      %p115 = scmp.ne.s32.totalorder %s103, %s104
      %p116 = scmp.eq.s32.totalorder %s31, 1
      %p117 = por %p115, %p116
      %p119 = scmp.ne.s32.totalorder %s104, %s118
      %p120 = scmp.eq.s32.totalorder %s31, 0
      %p121 = por %p119, %p120
      %s123 = sadd.s32 %s122, 1
      %p126 = scmp.eq.s32.totalorder %s25, 1
      %p127 = scmp.ne.s32.totalorder %s122, %s124
      %p128 = scmp.eq.s32.totalorder %s25, 0
      %p129 = por %p127, %p128
      %p130 = scmp.ne.s32.totalorder %s122, %s124
      %p131 = scmp.eq.s32.totalorder %s30, 1
      %p132 = por %p130, %p131
      %p133 = scmp.ne.s32.totalorder %s124, %s125
      %p134 = scmp.eq.s32.totalorder %s30, 0
      %p135 = por %p133, %p134
      %p136 = scmp.ne.s32.totalorder %s124, %s125
      %p137 = scmp.eq.s32.totalorder %s31, 1
      %p138 = por %p136, %p137
      %p140 = scmp.ne.s32.totalorder %s125, %s139
      %p141 = scmp.eq.s32.totalorder %s31, 0
      %p142 = por %p140, %p141
      %s144 = sadd.s32 %s143, 1
      %p147 = scmp.eq.s32.totalorder %s25, 1
      %p148 = scmp.ne.s32.totalorder %s143, %s145
      %p149 = scmp.eq.s32.totalorder %s25, 0
      %p150 = por %p148, %p149
      %p151 = scmp.ne.s32.totalorder %s143, %s145
      %p152 = scmp.eq.s32.totalorder %s30, 1
      %p153 = por %p151, %p152
      %p154 = scmp.ne.s32.totalorder %s145, %s146
      %p155 = scmp.eq.s32.totalorder %s30, 0
      %p156 = por %p154, %p155
      %p157 = scmp.ne.s32.totalorder %s145, %s146
      %p158 = scmp.eq.s32.totalorder %s31, 1
      %p159 = por %p157, %p158
      %p161 = scmp.ne.s32.totalorder %s146, %s160
      %p162 = scmp.eq.s32.totalorder %s31, 0
      %p163 = por %p161, %p162
      %s165 = sadd.s32 %s164, 1
      %p168 = scmp.eq.s32.totalorder %s25, 1
      %p169 = scmp.ne.s32.totalorder %s164, %s166
      %p170 = scmp.eq.s32.totalorder %s25, 0
      %p171 = por %p169, %p170
      %p172 = scmp.ne.s32.totalorder %s164, %s166
      %p173 = scmp.eq.s32.totalorder %s30, 1
      %p174 = por %p172, %p173
      %p175 = scmp.ne.s32.totalorder %s166, %s167
      %p176 = scmp.eq.s32.totalorder %s30, 0
      %p177 = por %p175, %p176
      %p178 = scmp.ne.s32.totalorder %s166, %s167
      %p179 = scmp.eq.s32.totalorder %s31, 1
      %p180 = por %p178, %p179
      %p182 = scmp.ne.s32.totalorder %s167, %s181
      %p183 = scmp.eq.s32.totalorder %s31, 0
      %p184 = por %p182, %p183
      %s186 = sadd.s32 %s185, 1
      %p189 = scmp.eq.s32.totalorder %s25, 1
      %p190 = scmp.ne.s32.totalorder %s185, %s187
      %p191 = scmp.eq.s32.totalorder %s25, 0
      %p192 = por %p190, %p191
      %p193 = scmp.ne.s32.totalorder %s185, %s187
      %p194 = scmp.eq.s32.totalorder %s30, 1
      %p195 = por %p193, %p194
      %p196 = scmp.ne.s32.totalorder %s187, %s188
      %p197 = scmp.eq.s32.totalorder %s30, 0
      %p198 = por %p196, %p197
      %p199 = scmp.ne.s32.totalorder %s187, %s188
      %p200 = scmp.eq.s32.totalorder %s31, 1
      %p201 = por %p199, %p200
      %p203 = scmp.ne.s32.totalorder %s188, %s202
      %p204 = scmp.eq.s32.totalorder %s31, 0
      %p205 = por %p203, %p204
      %s207 = sadd.s32 %s206, 1
      %p210 = scmp.eq.s32.totalorder %s25, 1
      %p211 = scmp.ne.s32.totalorder %s206, %s208
      %p212 = scmp.eq.s32.totalorder %s25, 0
      %p213 = por %p211, %p212
      %p214 = scmp.ne.s32.totalorder %s206, %s208
      %p215 = scmp.eq.s32.totalorder %s30, 1
      %p216 = por %p214, %p215
      %p217 = scmp.ne.s32.totalorder %s208, %s209
      %p218 = scmp.eq.s32.totalorder %s30, 0
      %p219 = por %p217, %p218
      %p220 = scmp.ne.s32.totalorder %s208, %s209
      %p221 = scmp.eq.s32.totalorder %s31, 1
      %p222 = por %p220, %p221
      %p224 = scmp.ne.s32.totalorder %s209, %s223
      %p225 = scmp.eq.s32.totalorder %s31, 0
      %p226 = por %p224, %p225
      %s228 = sadd.s32 %s227, 1
      %p231 = scmp.eq.s32.totalorder %s25, 1
      %p232 = scmp.ne.s32.totalorder %s227, %s229
      %p233 = scmp.eq.s32.totalorder %s25, 0
      %p234 = por %p232, %p233
      %p235 = scmp.ne.s32.totalorder %s227, %s229
      %p236 = scmp.eq.s32.totalorder %s30, 1
      %p237 = por %p235, %p236
      %p238 = scmp.ne.s32.totalorder %s229, %s230
      %p239 = scmp.eq.s32.totalorder %s30, 0
      %p240 = por %p238, %p239
      %p241 = scmp.ne.s32.totalorder %s229, %s230
      %p242 = scmp.eq.s32.totalorder %s31, 1
      %p243 = por %p241, %p242
      %p245 = scmp.ne.s32.totalorder %s230, %s244
      %p246 = scmp.eq.s32.totalorder %s31, 0
      %p247 = por %p245, %p246
      %s248 = ssub.s32 %s25, %s32
      %p249 = scmp.eq.s32.totalorder %s248, 0
      %s251 = sadd.s32 %s250, 1
      %s252 = scalar_select %p249, %s250, %s251
      %p255 = pneg %p249
      %p256 = scmp.eq.s32.totalorder %s25, 1
      %p257 = por %p255, %p256
      %p258 = scmp.ne.s32.totalorder %s250, %s253
      %p259 = scmp.eq.s32.totalorder %s25, 0
      %p260 = por %p258, %p259
      %p261 = scmp.ne.s32.totalorder %s250, %s253
      %p262 = scmp.eq.s32.totalorder %s30, 1
      %p263 = por %p261, %p262
      %p264 = scmp.ne.s32.totalorder %s253, %s254
      %p265 = scmp.eq.s32.totalorder %s30, 0
      %p266 = por %p264, %p265
      %p267 = scmp.ne.s32.totalorder %s253, %s254
      %p268 = scmp.eq.s32.totalorder %s31, 1
      %p269 = por %p267, %p268
      %p271 = scmp.ne.s32.totalorder %s254, %s270
      %p272 = scmp.eq.s32.totalorder %s31, 0
      %p273 = por %p271, %p272
      %p274 = scmp.le.s32.totalorder 1, %s25
      %p275 = scmp.lt.s32.totalorder %s25, 3
      %p276 = pnand %p274, %p275
      %p277 = pneg %p276
      // Predicated region
      $region9: #{tpu_custom_call.1} parent=5 // pred_check
        _
      $region10: #{tpu_custom_call.1} parent=5 // pred_check_branch
        %279 = sbr.rel (%p276) target = $region12
      $region11: #{tpu_custom_call.1} parent=5 // pred_region
        %s280 = ssub.s32 %s25, 1
        // Predicated region
        $region13: #{tpu_custom_call.1} parent=11 // pred_check
          %p281 = pneg %p72
        $region14: #{tpu_custom_call.1} parent=11 // pred_check_branch
          %283 = sbr.rel (%p281) target = $region16
        $region15: #{tpu_custom_call.1} parent=11 // pred_region
          _
        $region16: #{tpu_custom_call.1} parent=11 // pred_fallthru
          _
        // Predicated region
        $region17: #{tpu_custom_call.1} parent=11 // pred_check
          %p284 = pneg %p93
        $region18: #{tpu_custom_call.1} parent=11 // pred_check_branch
          %286 = sbr.rel (%p284) target = $region20
        $region19: #{tpu_custom_call.1} parent=11 // pred_region
          %s288 = ssub.s32 1024, 1024
          %289 = vsyncadd [#allocation6], %s288
          %s290 = sshll.u32 [#allocation5], 4
          %s291 = int_to_ptr.vmem [resolvable:$true] %s290
          %296 = dma.hbm_to_vmem [thread:$0]  %s2, 1024, %s291, [#allocation6], 64, 64, 4
        $region20: #{tpu_custom_call.1} parent=11 // pred_fallthru
          _
        // Predicated region
        $region21: #{tpu_custom_call.1} parent=11 // pred_check
          %p297 = pneg %p114
        $region22: #{tpu_custom_call.1} parent=11 // pred_check_branch
          %299 = sbr.rel (%p297) target = $region24
        $region23: #{tpu_custom_call.1} parent=11 // pred_region
          %s301 = ssub.s32 2048, 2048
          %302 = vsyncadd [#allocation6], %s301
          %s303 = sshll.u32 [#allocation7], 4
          %s304 = int_to_ptr.vmem [resolvable:$true] %s303
          %309 = dma.hbm_to_vmem [thread:$0]  %s3, 2048, %s304, [#allocation6], 128, 128, 8
        $region24: #{tpu_custom_call.1} parent=11 // pred_fallthru
          _
        // Predicated region
        $region25: #{tpu_custom_call.1} parent=11 // pred_check
          %p310 = pneg %p135
        $region26: #{tpu_custom_call.1} parent=11 // pred_check_branch
          %312 = sbr.rel (%p310) target = $region28
        $region27: #{tpu_custom_call.1} parent=11 // pred_region
          %s314 = ssub.s32 1024, 1024
          %315 = vsyncadd [#allocation9], %s314
          %s316 = sshll.u32 [#allocation8], 4
          %s317 = int_to_ptr.vmem [resolvable:$true] %s316
          %322 = dma.hbm_to_vmem [thread:$0]  %s4, 1024, %s317, [#allocation9], 64, 64, 4
        $region28: #{tpu_custom_call.1} parent=11 // pred_fallthru
          _
        // Predicated region
        $region29: #{tpu_custom_call.1} parent=11 // pred_check
          %p323 = pneg %p156
        $region30: #{tpu_custom_call.1} parent=11 // pred_check_branch
          %325 = sbr.rel (%p323) target = $region32
        $region31: #{tpu_custom_call.1} parent=11 // pred_region
          _
        $region32: #{tpu_custom_call.1} parent=11 // pred_fallthru
          _
        // Predicated region
        $region33: #{tpu_custom_call.1} parent=11 // pred_check
          %p326 = pneg %p177
        $region34: #{tpu_custom_call.1} parent=11 // pred_check_branch
          %328 = sbr.rel (%p326) target = $region36
        $region35: #{tpu_custom_call.1} parent=11 // pred_region
          %s330 = ssub.s32 4096, 4096
          %331 = vsyncadd [#allocation9], %s330
          %s332 = sshll.u32 [#allocation10], 4
          %s333 = int_to_ptr.vmem [resolvable:$true] %s332
          %338 = dma.hbm_to_vmem [thread:$0]  %s6, 4096, %s333, [#allocation9], 256, 256, 16
        $region36: #{tpu_custom_call.1} parent=11 // pred_fallthru
          _
        // Predicated region
        $region37: #{tpu_custom_call.1} parent=11 // pred_check
          %p339 = pneg %p198
        $region38: #{tpu_custom_call.1} parent=11 // pred_check_branch
          %341 = sbr.rel (%p339) target = $region40
        $region39: #{tpu_custom_call.1} parent=11 // pred_region
          _
        $region40: #{tpu_custom_call.1} parent=11 // pred_fallthru
          _
        // Predicated region
        $region41: #{tpu_custom_call.1} parent=11 // pred_check
          %p342 = pneg %p219
        $region42: #{tpu_custom_call.1} parent=11 // pred_check_branch
          %344 = sbr.rel (%p342) target = $region44
        $region43: #{tpu_custom_call.1} parent=11 // pred_region
          %s346 = ssub.s32 2048, 2048
          %347 = vsyncadd [#allocation12], %s346
          %s348 = sshll.u32 [#allocation11], 4
          %s349 = int_to_ptr.vmem [resolvable:$true] %s348
          %354 = dma.hbm_to_vmem [thread:$0]  %s8, 2048, %s349, [#allocation12], 64, 64, 4
        $region44: #{tpu_custom_call.1} parent=11 // pred_fallthru
          _
        // Predicated region
        $region45: #{tpu_custom_call.1} parent=11 // pred_check
          %p355 = pneg %p240
        $region46: #{tpu_custom_call.1} parent=11 // pred_check_branch
          %357 = sbr.rel (%p355) target = $region48
        $region47: #{tpu_custom_call.1} parent=11 // pred_region
          _
        $region48: #{tpu_custom_call.1} parent=11 // pred_fallthru
          _
      $region12: #{tpu_custom_call.1} parent=5 // pred_fallthru
        _
      %p358 = scmp.lt.s32.totalorder %s25, 2
      // Predicated region
      $region49: #{tpu_custom_call.1} parent=5 // pred_check
        %p359 = pneg %p358
      $region50: #{tpu_custom_call.1} parent=5 // pred_check_branch
        %361 = sbr.rel (%p359) target = $region52
      $region51: #{tpu_custom_call.1} parent=5 // pred_region
        // Predicated region
        $region53: #{tpu_custom_call.1} parent=51 // pred_check
          %p362 = pneg %p45
        $region54: #{tpu_custom_call.1} parent=51 // pred_check_branch
          %364 = sbr.rel (%p362) target = $region56
        $region55: #{tpu_custom_call.1} parent=51 // pred_region
          %s365 = sand.u32 %s35, 1
          %s366 = scalar_lea.sflag [#allocation3], %s365
          %s367 = sand.u32 %s35, 1
          %s368 = smul.addr %s367, 16
          %s369 = scalar_lea.vmem [#allocation2], %s368
          %s371 = ssub.s32 256, 256
          %372 = vsyncadd %s366, %s371
          %s373 = smul.addr %s25, 2
          %s374 = smul.addr %s373, 128
          %s375 = scalar_lea.hbm %s0, %s374
          %s376 = sshll.u32 %s369, 4
          %s377 = int_to_ptr.vmem [resolvable:$true] %s376
          %382 = dma.hbm_to_vmem [thread:$0]  %s375, 256, %s377, %s366, 128, 128, 8
        $region56: #{tpu_custom_call.1} parent=51 // pred_fallthru
          _
      $region52: #{tpu_custom_call.1} parent=5 // pred_fallthru
        _
      %p383 = scmp.le.s32.totalorder 1, %s25
      %p384 = scmp.lt.s32.totalorder %s25, 3
      %p385 = pnand %p383, %p384
      %p386 = pneg %p385
      // Predicated region
      $region57: #{tpu_custom_call.1} parent=5 // pred_check
        _
      $region58: #{tpu_custom_call.1} parent=5 // pred_check_branch
        %388 = sbr.rel (%p385) target = $region60
      $region59: #{tpu_custom_call.1} parent=5 // pred_region
        %s389 = ssub.s32 %s25, 1
        %s390 = sand.u32 %s38, 1
        %s391 = scalar_lea.sflag [#allocation3], %s390
        %s392 = sand.u32 %s38, 1
        %s393 = smul.addr %s392, 16
        %s394 = scalar_lea.vmem [#allocation2], %s393
        // Predicated region
        $region61: #{tpu_custom_call.1} parent=59 // pred_check
          %p395 = pneg %p51
        $region62: #{tpu_custom_call.1} parent=59 // pred_check_branch
          %397 = sbr.rel (%p395) target = $region64
        $region63: #{tpu_custom_call.1} parent=59 // pred_region
          %398 = dma.done %s391, 256
        $region64: #{tpu_custom_call.1} parent=59 // pred_fallthru
          _
        // Predicated region
        $region65: #{tpu_custom_call.1} parent=59 // pred_check
          %p399 = pneg %p93
        $region66: #{tpu_custom_call.1} parent=59 // pred_check_branch
          %401 = sbr.rel (%p399) target = $region68
        $region67: #{tpu_custom_call.1} parent=59 // pred_region
          %402 = dma.done [#allocation6], 1024
        $region68: #{tpu_custom_call.1} parent=59 // pred_fallthru
          _
        // Predicated region
        $region69: #{tpu_custom_call.1} parent=59 // pred_check
          %p403 = pneg %p114
        $region70: #{tpu_custom_call.1} parent=59 // pred_check_branch
          %405 = sbr.rel (%p403) target = $region72
        $region71: #{tpu_custom_call.1} parent=59 // pred_region
          %406 = dma.done [#allocation6], 2048
        $region72: #{tpu_custom_call.1} parent=59 // pred_fallthru
          _
        // Predicated region
        $region73: #{tpu_custom_call.1} parent=59 // pred_check
          %p407 = pneg %p135
        $region74: #{tpu_custom_call.1} parent=59 // pred_check_branch
          %409 = sbr.rel (%p407) target = $region76
        $region75: #{tpu_custom_call.1} parent=59 // pred_region
          %410 = dma.done [#allocation9], 1024
        $region76: #{tpu_custom_call.1} parent=59 // pred_fallthru
          _
        // Predicated region
        $region77: #{tpu_custom_call.1} parent=59 // pred_check
          %p411 = pneg %p177
        $region78: #{tpu_custom_call.1} parent=59 // pred_check_branch
          %413 = sbr.rel (%p411) target = $region80
        $region79: #{tpu_custom_call.1} parent=59 // pred_region
          %414 = dma.done [#allocation9], 4096
        $region80: #{tpu_custom_call.1} parent=59 // pred_fallthru
          _
        // Predicated region
        $region81: #{tpu_custom_call.1} parent=59 // pred_check
          %p415 = pneg %p219
        $region82: #{tpu_custom_call.1} parent=59 // pred_check_branch
          %417 = sbr.rel (%p415) target = $region84
        $region83: #{tpu_custom_call.1} parent=59 // pred_region
          %418 = dma.done [#allocation12], 2048
        $region84: #{tpu_custom_call.1} parent=59 // pred_fallthru
          _
        %s419 = sand.u32 %s38, 1
        %s420 = scalar_lea.sflag [#allocation3], %s419
        %s421 = sand.u32 %s38, 1
        %s422 = smul.addr %s421, 16
        %s423 = scalar_lea.vmem [#allocation2], %s422
        %p424 = pneg %p51
        %p425 = pneg %p48
        %p426 = pneg %p72
        %p427 = pneg %p69
        %p428 = pneg %p93
        %p429 = pneg %p90
        %p430 = pneg %p114
        %p431 = pneg %p111
        %p432 = pneg %p135
        %p433 = pneg %p132
        %p434 = pneg %p156
        %p435 = pneg %p153
        %p436 = pneg %p177
        %p437 = pneg %p174
        %p438 = pneg %p198
        %p439 = pneg %p195
        %p440 = pneg %p219
        %p441 = pneg %p216
        %p442 = pneg %p240
        %p443 = pneg %p237
        %p444 = pneg %p266
        %p445 = pneg %p263
        %s446 = sand.u32 %s253, 1
        %s447 = scalar_lea.sflag [#allocation4], %s446
        %s448 = sand.u32 %s253, 1
        %s449 = smul.addr %s448, 16
        %s450 = scalar_lea.vmem [#allocation13], %s449
        %v452 = vld [vmem:[%s394] sm:$0xff]
        %v453 = vld [vmem:[%s394 + $0x8] sm:$0xff]
        %v454 = vld [vmem:[%s1] sm:$0x1]
        %v455 = vld [vmem:[#allocation5] sm:$0xf]
        %v456 = vld [vmem:[#allocation5 + $0x4] sm:$0xf]
        %v457 = vld [vmem:[#allocation5 + $0x8] sm:$0xf]
        %v458 = vld [vmem:[#allocation5 + $0xc] sm:$0xf]
        %v459 = vld [vmem:[#allocation5 + $0x10] sm:$0xf]
        %v460 = vld [vmem:[#allocation5 + $0x14] sm:$0xf]
        %v461 = vld [vmem:[#allocation5 + $0x18] sm:$0xf]
        %v462 = vld [vmem:[#allocation5 + $0x1c] sm:$0xf]
        %v463 = vld [vmem:[#allocation5 + $0x20] sm:$0xf]
        %v464 = vld [vmem:[#allocation5 + $0x24] sm:$0xf]
        %v465 = vld [vmem:[#allocation5 + $0x28] sm:$0xf]
        %v466 = vld [vmem:[#allocation5 + $0x2c] sm:$0xf]
        %v467 = vld [vmem:[#allocation5 + $0x30] sm:$0xf]
        %v468 = vld [vmem:[#allocation5 + $0x34] sm:$0xf]
        %v469 = vld [vmem:[#allocation5 + $0x38] sm:$0xf]
        %v470 = vld [vmem:[#allocation5 + $0x3c] sm:$0xf]
        %v471 = vld [vmem:[#allocation7] sm:$0xff]
        %v472 = vld [vmem:[#allocation7 + $0x8] sm:$0xff]
        %v473 = vld [vmem:[#allocation7 + $0x10] sm:$0xff]
        %v474 = vld [vmem:[#allocation7 + $0x18] sm:$0xff]
        %v475 = vld [vmem:[#allocation7 + $0x20] sm:$0xff]
        %v476 = vld [vmem:[#allocation7 + $0x28] sm:$0xff]
        %v477 = vld [vmem:[#allocation7 + $0x30] sm:$0xff]
        %v478 = vld [vmem:[#allocation7 + $0x38] sm:$0xff]
        %v479 = vld [vmem:[#allocation7 + $0x40] sm:$0xff]
        %v480 = vld [vmem:[#allocation7 + $0x48] sm:$0xff]
        %v481 = vld [vmem:[#allocation7 + $0x50] sm:$0xff]
        %v482 = vld [vmem:[#allocation7 + $0x58] sm:$0xff]
        %v483 = vld [vmem:[#allocation7 + $0x60] sm:$0xff]
        %v484 = vld [vmem:[#allocation7 + $0x68] sm:$0xff]
        %v485 = vld [vmem:[#allocation7 + $0x70] sm:$0xff]
        %v486 = vld [vmem:[#allocation7 + $0x78] sm:$0xff]
        %v487 = vld [vmem:[#allocation8] sm:$0xf]
        %v488 = vld [vmem:[#allocation8 + $0x4] sm:$0xf]
        %v489 = vld [vmem:[#allocation8 + $0x8] sm:$0xf]
        %v490 = vld [vmem:[#allocation8 + $0xc] sm:$0xf]
        %v491 = vld [vmem:[#allocation8 + $0x10] sm:$0xf]
        %v492 = vld [vmem:[#allocation8 + $0x14] sm:$0xf]
        %v493 = vld [vmem:[#allocation8 + $0x18] sm:$0xf]
        %v494 = vld [vmem:[#allocation8 + $0x1c] sm:$0xf]
        %v495 = vld [vmem:[#allocation8 + $0x20] sm:$0xf]
        %v496 = vld [vmem:[#allocation8 + $0x24] sm:$0xf]
        %v497 = vld [vmem:[#allocation8 + $0x28] sm:$0xf]
        %v498 = vld [vmem:[#allocation8 + $0x2c] sm:$0xf]
        %v499 = vld [vmem:[#allocation8 + $0x30] sm:$0xf]
        %v500 = vld [vmem:[#allocation8 + $0x34] sm:$0xf]
        %v501 = vld [vmem:[#allocation8 + $0x38] sm:$0xf]
        %v502 = vld [vmem:[#allocation8 + $0x3c] sm:$0xf]
        %v503 = vld [vmem:[%s5] sm:$0x1]
        %v504 = vld [vmem:[#allocation10] sm:$0xff]
        %v505 = vld [vmem:[#allocation10 + $0x8] sm:$0xff]
        %v506 = vld [vmem:[#allocation10 + $0x10] sm:$0xff]
        %v507 = vld [vmem:[#allocation10 + $0x18] sm:$0xff]
        %v508 = vld [vmem:[#allocation10 + $0x20] sm:$0xff]
        %v509 = vld [vmem:[#allocation10 + $0x28] sm:$0xff]
        %v510 = vld [vmem:[#allocation10 + $0x30] sm:$0xff]
        %v511 = vld [vmem:[#allocation10 + $0x38] sm:$0xff]
        %v512 = vld [vmem:[#allocation10 + $0x40] sm:$0xff]
        %v513 = vld [vmem:[#allocation10 + $0x48] sm:$0xff]
        %v514 = vld [vmem:[#allocation10 + $0x50] sm:$0xff]
        %v515 = vld [vmem:[#allocation10 + $0x58] sm:$0xff]
        %v516 = vld [vmem:[#allocation10 + $0x60] sm:$0xff]
        %v517 = vld [vmem:[#allocation10 + $0x68] sm:$0xff]
        %v518 = vld [vmem:[#allocation10 + $0x70] sm:$0xff]
        %v519 = vld [vmem:[#allocation10 + $0x78] sm:$0xff]
        %v520 = vld [vmem:[#allocation10 + $0x80] sm:$0xff]
        %v521 = vld [vmem:[#allocation10 + $0x88] sm:$0xff]
        %v522 = vld [vmem:[#allocation10 + $0x90] sm:$0xff]
        %v523 = vld [vmem:[#allocation10 + $0x98] sm:$0xff]
        %v524 = vld [vmem:[#allocation10 + $0xa0] sm:$0xff]
        %v525 = vld [vmem:[#allocation10 + $0xa8] sm:$0xff]
        %v526 = vld [vmem:[#allocation10 + $0xb0] sm:$0xff]
        %v527 = vld [vmem:[#allocation10 + $0xb8] sm:$0xff]
        %v528 = vld [vmem:[#allocation10 + $0xc0] sm:$0xff]
        %v529 = vld [vmem:[#allocation10 + $0xc8] sm:$0xff]
        %v530 = vld [vmem:[#allocation10 + $0xd0] sm:$0xff]
        %v531 = vld [vmem:[#allocation10 + $0xd8] sm:$0xff]
        %v532 = vld [vmem:[#allocation10 + $0xe0] sm:$0xff]
        %v533 = vld [vmem:[#allocation10 + $0xe8] sm:$0xff]
        %v534 = vld [vmem:[#allocation10 + $0xf0] sm:$0xff]
        %v535 = vld [vmem:[#allocation10 + $0xf8] sm:$0xff]
        %v536 = vld [vmem:[%s7] sm:$0xf]
        %v537 = vld [vmem:[#allocation11] sm:$0xf]
        %v538 = vld [vmem:[#allocation11 + $0x4] sm:$0xf]
        %v539 = vld [vmem:[#allocation11 + $0x8] sm:$0xf]
        %v540 = vld [vmem:[#allocation11 + $0xc] sm:$0xf]
        %v541 = vld [vmem:[#allocation11 + $0x10] sm:$0xf]
        %v542 = vld [vmem:[#allocation11 + $0x14] sm:$0xf]
        %v543 = vld [vmem:[#allocation11 + $0x18] sm:$0xf]
        %v544 = vld [vmem:[#allocation11 + $0x1c] sm:$0xf]
        %v545 = vld [vmem:[#allocation11 + $0x20] sm:$0xf]
        %v546 = vld [vmem:[#allocation11 + $0x24] sm:$0xf]
        %v547 = vld [vmem:[#allocation11 + $0x28] sm:$0xf]
        %v548 = vld [vmem:[#allocation11 + $0x2c] sm:$0xf]
        %v549 = vld [vmem:[#allocation11 + $0x30] sm:$0xf]
        %v550 = vld [vmem:[#allocation11 + $0x34] sm:$0xf]
        %v551 = vld [vmem:[#allocation11 + $0x38] sm:$0xf]
        %v552 = vld [vmem:[#allocation11 + $0x3c] sm:$0xf]
        %v553 = vld [vmem:[#allocation11 + $0x40] sm:$0xf]
        %v554 = vld [vmem:[#allocation11 + $0x44] sm:$0xf]
        %v555 = vld [vmem:[#allocation11 + $0x48] sm:$0xf]
        %v556 = vld [vmem:[#allocation11 + $0x4c] sm:$0xf]
        %v557 = vld [vmem:[#allocation11 + $0x50] sm:$0xf]
        %v558 = vld [vmem:[#allocation11 + $0x54] sm:$0xf]
        %v559 = vld [vmem:[#allocation11 + $0x58] sm:$0xf]
        %v560 = vld [vmem:[#allocation11 + $0x5c] sm:$0xf]
        %v561 = vld [vmem:[#allocation11 + $0x60] sm:$0xf]
        %v562 = vld [vmem:[#allocation11 + $0x64] sm:$0xf]
        %v563 = vld [vmem:[#allocation11 + $0x68] sm:$0xf]
        %v564 = vld [vmem:[#allocation11 + $0x6c] sm:$0xf]
        %v565 = vld [vmem:[#allocation11 + $0x70] sm:$0xf]
        %v566 = vld [vmem:[#allocation11 + $0x74] sm:$0xf]
        %v567 = vld [vmem:[#allocation11 + $0x78] sm:$0xf]
        %v568 = vld [vmem:[#allocation11 + $0x7c] sm:$0xf]
        %v569 = vld [vmem:[%s9] sm:$0x1]
        %v570 = vmul.f32 %v452, %v452
        %v571 = vmul.f32 %v453, %v453
        %572 = vadd.xlane.f32.xlu0 %v570
        %v573 = vpop.xlane.xlu0 %572
        %574 = vadd.xlane.f32.xlu0 %v571
        %v575 = vpop.xlane.xlu0 %574
        %v576 = vrsqrt.pop %v573
        %v577 = vmul.f32 %v573, %v576
        %vm578 = vcmp.eq.f32.partialorder %v573, inf
        %v579 = vsel %vm578, %v573, %v577
        %vm580 = vcmp.eq.f32.partialorder %v573, 0.0
        %v581 = vand.u32 %v573, 2147483648
        %v582 = vsel %vm580, %v581, %v579
        %v583 = vrsqrt.pop %v575
        %v584 = vmul.f32 %v575, %v583
        %vm585 = vcmp.eq.f32.partialorder %v575, inf
        %v586 = vsel %vm585, %v575, %v584
        %vm587 = vcmp.eq.f32.partialorder %v575, 0.0
        %v588 = vand.u32 %v575, 2147483648
        %v589 = vsel %vm587, %v588, %v586
        %v590 = vmax.f32 %v582, 1e-12
        %v591 = vmax.f32 %v589, 1e-12
        %v592 = vrcp.pop %v590
        %v593 = vmul.f32 11.313708, %v592
        %v594 = vrcp.pop %v591
        %v595 = vmul.f32 11.313708, %v594
        %v596 = vmul.f32 %v452, %v593
        %v597 = vmul.f32 %v453, %v595
        %v599 = vlaneseq
        %v600 = vshrl.u32 %v599, 7
        %v601 = vsub.s32 0, %v600
        %v602 = vrot.slane %v454, %v601
        %v604 = vmul.f32 %v596, %v602
        %v605 = vmul.f32 %v597, %v602
        %v606 = vpack.c.bf16 %v605, %v604
        %v623 = vunpack.c.l.b16 %v455
        %v624 = vunpack.c.l.b16 %v456
        %v625 = vunpack.c.l.b16 %v457
        %v626 = vunpack.c.l.b16 %v458
        %v627 = vunpack.c.l.b16 %v459
        %v628 = vunpack.c.l.b16 %v460
        %v629 = vunpack.c.l.b16 %v461
        %v630 = vunpack.c.l.b16 %v462
        %v631 = vunpack.c.l.b16 %v463
        %v632 = vunpack.c.l.b16 %v464
        %v633 = vunpack.c.l.b16 %v465
        %v634 = vunpack.c.l.b16 %v466
        %v635 = vunpack.c.l.b16 %v467
        %v636 = vunpack.c.l.b16 %v468
        %v637 = vunpack.c.l.b16 %v469
        %v638 = vunpack.c.l.b16 %v470
        %v639 = vpack.c.b16 %v624, %v623
        %v640 = vpack.c.b16 %v626, %v625
        %v641 = vpack.c.b16 %v628, %v627
        %v642 = vpack.c.b16 %v630, %v629
        %v643 = vpack.c.b16 %v632, %v631
        %v644 = vpack.c.b16 %v634, %v633
        %v645 = vpack.c.b16 %v636, %v635
        %v646 = vpack.c.b16 %v638, %v637
        %655 = vmatprep.subr.bf16.mxu0 0
        %656 = vmatpush1.bf16.msra.mxu0 %v639
        %657 = vmatprep.subr.bf16.mxu0 0
        %658 = vmatpush1.bf16.msra.mxu0 %v640
        %659 = vmatprep.subr.bf16.mxu0 0
        %660 = vmatpush1.bf16.msra.mxu0 %v641
        %661 = vmatprep.subr.bf16.mxu0 0
        %662 = vmatpush1.bf16.msra.mxu0 %v642
        %663 = vmatprep.subr.bf16.mxu0 0
        %664 = vmatpush1.bf16.msra.mxu0 %v643
        %665 = vmatprep.subr.bf16.mxu0 0
        %666 = vmatpush1.bf16.msra.mxu0 %v644
        %667 = vmatprep.subr.bf16.mxu0 0
        %668 = vmatpush1.bf16.msra.mxu0 %v645
        %669 = vmatprep.subr.bf16.mxu0 0
        %670 = vmatpush1.bf16.msra.mxu0 %v646
        %671 = vmatprep.subr.bf16.mxu0 0
        %672 = vmatpush1.bf16.msra.mxu0 0
        %673 = vmatprep.subr.bf16.mxu0 0
        %674 = vmatpush1.bf16.msra.mxu0 0
        %675 = vmatprep.subr.bf16.mxu0 0
        %676 = vmatpush1.bf16.msra.mxu0 0
        %677 = vmatprep.subr.bf16.mxu0 0
        %678 = vmatpush1.bf16.msra.mxu0 0
        %679 = vmatprep.subr.bf16.mxu0 0
        %680 = vmatpush1.bf16.msra.mxu0 0
        %681 = vmatprep.subr.bf16.mxu0 0
        %682 = vmatpush1.bf16.msra.mxu0 0
        %683 = vmatprep.subr.bf16.mxu0 0
        %684 = vmatpush1.bf16.msra.mxu0 0
        %685 = vmatprep.subr.bf16.mxu0 0
        %686 = vmatpush1.bf16.msra.mxu0 0
        %687 = vmatprep.mubr.bf16.mxu0 0
        %688 = vmatmul.mubr.bf16.gmra.mrb[0].mxu0 %v606
        %v689 = vpop.f32.mrb[0].mxu0
        %v690 = vadd.f32 0.0, %v689
        %v691 = vpop.f32.mrb[0].mxu0
        %v692 = vpop.f32.mrb[0].mxu0
        %v693 = vadd.f32 0.0, %v692
        %v694 = vpop.f32.mrb[0].mxu0
        %695 = vdwg.mxu0
        %v712 = vunpack.c.l.b16 %v471
        %v713 = vunpack.c.h.b16 %v471
        %v714 = vunpack.c.l.b16 %v472
        %v715 = vunpack.c.h.b16 %v472
        %v716 = vunpack.c.l.b16 %v473
        %v717 = vunpack.c.h.b16 %v473
        %v718 = vunpack.c.l.b16 %v474
        %v719 = vunpack.c.h.b16 %v474
        %v720 = vunpack.c.l.b16 %v475
        %v721 = vunpack.c.h.b16 %v475
        %v722 = vunpack.c.l.b16 %v476
        %v723 = vunpack.c.h.b16 %v476
        %v724 = vunpack.c.l.b16 %v477
        %v725 = vunpack.c.h.b16 %v477
        %v726 = vunpack.c.l.b16 %v478
        %v727 = vunpack.c.h.b16 %v478
        %v728 = vunpack.c.l.b16 %v479
        %v729 = vunpack.c.h.b16 %v479
        %v730 = vunpack.c.l.b16 %v480
        %v731 = vunpack.c.h.b16 %v480
        %v732 = vunpack.c.l.b16 %v481
        %v733 = vunpack.c.h.b16 %v481
        %v734 = vunpack.c.l.b16 %v482
        %v735 = vunpack.c.h.b16 %v482
        %v736 = vunpack.c.l.b16 %v483
        %v737 = vunpack.c.h.b16 %v483
        %v738 = vunpack.c.l.b16 %v484
        %v739 = vunpack.c.h.b16 %v484
        %v740 = vunpack.c.l.b16 %v485
        %v741 = vunpack.c.h.b16 %v485
        %v742 = vunpack.c.l.b16 %v486
        %v743 = vunpack.c.h.b16 %v486
        %v744 = vpack.c.b16 %v714, %v712
        %v745 = vpack.c.b16 %v715, %v713
        %v746 = vpack.c.b16 %v718, %v716
        %v747 = vpack.c.b16 %v719, %v717
        %v748 = vpack.c.b16 %v722, %v720
        %v749 = vpack.c.b16 %v723, %v721
        %v750 = vpack.c.b16 %v726, %v724
        %v751 = vpack.c.b16 %v727, %v725
        %v752 = vpack.c.b16 %v730, %v728
        %v753 = vpack.c.b16 %v731, %v729
        %v754 = vpack.c.b16 %v734, %v732
        %v755 = vpack.c.b16 %v735, %v733
        %v756 = vpack.c.b16 %v738, %v736
        %v757 = vpack.c.b16 %v739, %v737
        %v758 = vpack.c.b16 %v742, %v740
        %v759 = vpack.c.b16 %v743, %v741
        %776 = vmatprep.subr.bf16.mxu0 %v745
        %777 = vmatpush1.bf16.msra.mxu0 %v744
        %778 = vmatprep.subr.bf16.mxu0 %v747
        %779 = vmatpush1.bf16.msra.mxu0 %v746
        %780 = vmatprep.subr.bf16.mxu0 %v749
        %781 = vmatpush1.bf16.msra.mxu0 %v748
        %782 = vmatprep.subr.bf16.mxu0 %v751
        %783 = vmatpush1.bf16.msra.mxu0 %v750
        %784 = vmatprep.subr.bf16.mxu0 %v753
        %785 = vmatpush1.bf16.msra.mxu0 %v752
        %786 = vmatprep.subr.bf16.mxu0 %v755
        %787 = vmatpush1.bf16.msra.mxu0 %v754
        %788 = vmatprep.subr.bf16.mxu0 %v757
        %789 = vmatpush1.bf16.msra.mxu0 %v756
        %790 = vmatprep.subr.bf16.mxu0 %v759
        %791 = vmatpush1.bf16.msra.mxu0 %v758
        %792 = vmatprep.subr.bf16.mxu0 0
        %793 = vmatpush1.bf16.msra.mxu0 0
        %794 = vmatprep.subr.bf16.mxu0 0
        %795 = vmatpush1.bf16.msra.mxu0 0
        %796 = vmatprep.subr.bf16.mxu0 0
        %797 = vmatpush1.bf16.msra.mxu0 0
        %798 = vmatprep.subr.bf16.mxu0 0
        %799 = vmatpush1.bf16.msra.mxu0 0
        %800 = vmatprep.subr.bf16.mxu0 0
        %801 = vmatpush1.bf16.msra.mxu0 0
        %802 = vmatprep.subr.bf16.mxu0 0
        %803 = vmatpush1.bf16.msra.mxu0 0
        %804 = vmatprep.subr.bf16.mxu0 0
        %805 = vmatpush1.bf16.msra.mxu0 0
        %806 = vmatprep.subr.bf16.mxu0 0
        %807 = vmatpush1.bf16.msra.mxu0 0
        %808 = vmatprep.mubr.bf16.mxu0 0
        %809 = vmatmul.mubr.bf16.gmra.mrb[0].mxu0 %v606
        %v810 = vpop.f32.mrb[0].mxu0
        %v811 = vadd.f32 0.0, %v810
        %v812 = vpop.f32.mrb[0].mxu0
        %v813 = vadd.f32 0.0, %v812
        %v814 = vpop.f32.mrb[0].mxu0
        %v815 = vadd.f32 0.0, %v814
        %v816 = vpop.f32.mrb[0].mxu0
        %v817 = vadd.f32 0.0, %v816
        %818 = vdwg.mxu0
        %v819 = vpack.c.bf16 %v693, %v690
        %v820 = vpack.c.bf16 %v815, %v811
        %v821 = vpack.c.bf16 %v817, %v813
        %vm822 = vcmask 261120
        %v824 = vsel %vm822, %v819, 0
        %v827 = vsel %vm822, %v820, 0
        %829 = vmatprep.subr.bf16.mxu0 0
        %830 = vmatpush1.bf16.xpose.msra.mxu0 %v827
        %831 = vmatprep.subr.bf16.mxu0 0
        %832 = vmatpush1.bf16.xpose.msra.mxu0 0
        %833 = vmatprep.subr.bf16.mxu0 0
        %834 = vmatpush1.bf16.xpose.msra.mxu0 0
        %835 = vmatprep.subr.bf16.mxu0 0
        %836 = vmatpush1.bf16.xpose.msra.mxu0 0
        %837 = vmatprep.subr.bf16.mxu0 0
        %838 = vmatpush1.bf16.xpose.msra.mxu0 0
        %839 = vmatprep.subr.bf16.mxu0 0
        %840 = vmatpush1.bf16.xpose.msra.mxu0 0
        %841 = vmatprep.subr.bf16.mxu0 0
        %842 = vmatpush1.bf16.xpose.msra.mxu0 0
        %843 = vmatprep.subr.bf16.mxu0 0
        %844 = vmatpush1.bf16.xpose.msra.mxu0 0
        %845 = vmatprep.subr.bf16.mxu0 0
        %846 = vmatpush1.bf16.xpose.msra.mxu0 0
        %847 = vmatprep.subr.bf16.mxu0 0
        %848 = vmatpush1.bf16.xpose.msra.mxu0 0
        %849 = vmatprep.subr.bf16.mxu0 0
        %850 = vmatpush1.bf16.xpose.msra.mxu0 0
        %851 = vmatprep.subr.bf16.mxu0 0
        %852 = vmatpush1.bf16.xpose.msra.mxu0 0
        %853 = vmatprep.subr.bf16.mxu0 0
        %854 = vmatpush1.bf16.xpose.msra.mxu0 0
        %855 = vmatprep.subr.bf16.mxu0 0
        %856 = vmatpush1.bf16.xpose.msra.mxu0 0
        %857 = vmatprep.subr.bf16.mxu0 0
        %858 = vmatpush1.bf16.xpose.msra.mxu0 0
        %859 = vmatprep.subr.bf16.mxu0 0
        %860 = vmatpush1.bf16.xpose.msra.mxu0 0
        %861 = vmatprep.mubr.bf16.mxu0 0
        %862 = vmatmul.mubr.bf16.gmra.mrb[0].mxu0 %v824
        %v863 = vpop.f32.mrb[0].mxu0
        %v864 = vadd.f32 0.0, %v863
        %v865 = vpop.f32.mrb[0].mxu0
        %v866 = vpop.f32.mrb[0].mxu0
        %v867 = vadd.f32 0.0, %v866
        %v868 = vpop.f32.mrb[0].mxu0
        %869 = vdwg.mxu0
        %v870 = vmul.f32 %v864, 0.17677669
        %v871 = vmul.f32 %v867, 0.17677669
        %vm872 = vcmask 130048
        %v873 = vsel %vm872, %v870, -inf
        %874 = vmax.xlane.f32.xlu0 %v873
        %v875 = vpop.xlane.xlu0 %874
        %v876 = vsel %vm872, %v871, -inf
        %877 = vmax.xlane.f32.xlu0 %v876
        %v878 = vpop.xlane.xlu0 %877
        %v879 = vsub.f32 %v870, %v875
        %v880 = vsub.f32 %v871, %v878
        %v881 = vmul.f32 %v879, 1.442695
        %v882 = vpow.pop %v881
        %v883 = vmul.f32 %v880, 1.442695
        %v884 = vpow.pop %v883
        %v885 = vsel %vm872, %v882, 0.0
        %886 = vadd.xlane.f32.xlu0 %v885
        %v887 = vpop.xlane.xlu0 %886
        %v888 = vsel %vm872, %v884, 0.0
        %889 = vadd.xlane.f32.xlu0 %v888
        %v890 = vpop.xlane.xlu0 %889
        %v891 = vrcp.pop %v887
        %v892 = vmul.f32 %v882, %v891
        %v893 = vrcp.pop %v890
        %v894 = vmul.f32 %v884, %v893
        %v895 = vpack.c.bf16 %v894, %v892
        %v897 = vsel %vm872, %v895, 0
        %899 = vmatprep.subr.bf16.mxu0 0
        %900 = vmatpush1.bf16.msra.mxu0 %v821
        %901 = vmatprep.subr.bf16.mxu0 0
        %902 = vmatpush1.bf16.msra.mxu0 0
        %903 = vmatprep.subr.bf16.mxu0 0
        %904 = vmatpush1.bf16.msra.mxu0 0
        %905 = vmatprep.subr.bf16.mxu0 0
        %906 = vmatpush1.bf16.msra.mxu0 0
        %907 = vmatprep.subr.bf16.mxu0 0
        %908 = vmatpush1.bf16.msra.mxu0 0
        %909 = vmatprep.subr.bf16.mxu0 0
        %910 = vmatpush1.bf16.msra.mxu0 0
        %911 = vmatprep.subr.bf16.mxu0 0
        %912 = vmatpush1.bf16.msra.mxu0 0
        %913 = vmatprep.subr.bf16.mxu0 0
        %914 = vmatpush1.bf16.msra.mxu0 0
        %915 = vmatprep.subr.bf16.mxu0 0
        %916 = vmatpush1.bf16.msra.mxu0 0
        %917 = vmatprep.subr.bf16.mxu0 0
        %918 = vmatpush1.bf16.msra.mxu0 0
        %919 = vmatprep.subr.bf16.mxu0 0
        %920 = vmatpush1.bf16.msra.mxu0 0
        %921 = vmatprep.subr.bf16.mxu0 0
        %922 = vmatpush1.bf16.msra.mxu0 0
        %923 = vmatprep.subr.bf16.mxu0 0
        %924 = vmatpush1.bf16.msra.mxu0 0
        %925 = vmatprep.subr.bf16.mxu0 0
        %926 = vmatpush1.bf16.msra.mxu0 0
        %927 = vmatprep.subr.bf16.mxu0 0
        %928 = vmatpush1.bf16.msra.mxu0 0
        %929 = vmatprep.subr.bf16.mxu0 0
        %930 = vmatpush1.bf16.msra.mxu0 0
        %931 = vmatprep.mubr.bf16.mxu0 0
        %932 = vmatmul.mubr.bf16.gmra.mrb[0].mxu0 %v897
        %v933 = vpop.f32.mrb[0].mxu0
        %v934 = vadd.f32 0.0, %v933
        %v935 = vpop.f32.mrb[0].mxu0
        %v936 = vpop.f32.mrb[0].mxu0
        %v937 = vadd.f32 0.0, %v936
        %v938 = vpop.f32.mrb[0].mxu0
        %939 = vdwg.mxu0
        %v940 = vpack.c.bf16 %v937, %v934
        %942 = vrot.lane.b32.xlu0 %v819, 96
        %v943 = vpop.permute.xlu0 %942
        %945 = vrot.lane.b32.xlu0 %v820, 96
        %v946 = vpop.permute.xlu0 %945
        %v948 = vsel %vm822, %v943, 0
        %v951 = vsel %vm822, %v946, 0
        %953 = vmatprep.subr.bf16.mxu0 0
        %954 = vmatpush1.bf16.xpose.msra.mxu0 %v951
        %955 = vmatprep.subr.bf16.mxu0 0
        %956 = vmatpush1.bf16.xpose.msra.mxu0 0
        %957 = vmatprep.subr.bf16.mxu0 0
        %958 = vmatpush1.bf16.xpose.msra.mxu0 0
        %959 = vmatprep.subr.bf16.mxu0 0
        %960 = vmatpush1.bf16.xpose.msra.mxu0 0
        %961 = vmatprep.subr.bf16.mxu0 0
        %962 = vmatpush1.bf16.xpose.msra.mxu0 0
        %963 = vmatprep.subr.bf16.mxu0 0
        %964 = vmatpush1.bf16.xpose.msra.mxu0 0
        %965 = vmatprep.subr.bf16.mxu0 0
        %966 = vmatpush1.bf16.xpose.msra.mxu0 0
        %967 = vmatprep.subr.bf16.mxu0 0
        %968 = vmatpush1.bf16.xpose.msra.mxu0 0
        %969 = vmatprep.subr.bf16.mxu0 0
        %970 = vmatpush1.bf16.xpose.msra.mxu0 0
        %971 = vmatprep.subr.bf16.mxu0 0
        %972 = vmatpush1.bf16.xpose.msra.mxu0 0
        %973 = vmatprep.subr.bf16.mxu0 0
        %974 = vmatpush1.bf16.xpose.msra.mxu0 0
        %975 = vmatprep.subr.bf16.mxu0 0
        %976 = vmatpush1.bf16.xpose.msra.mxu0 0
        %977 = vmatprep.subr.bf16.mxu0 0
        %978 = vmatpush1.bf16.xpose.msra.mxu0 0
        %979 = vmatprep.subr.bf16.mxu0 0
        %980 = vmatpush1.bf16.xpose.msra.mxu0 0
        %981 = vmatprep.subr.bf16.mxu0 0
        %982 = vmatpush1.bf16.xpose.msra.mxu0 0
        %983 = vmatprep.subr.bf16.mxu0 0
        %984 = vmatpush1.bf16.xpose.msra.mxu0 0
        %985 = vmatprep.mubr.bf16.mxu0 0
        %986 = vmatmul.mubr.bf16.gmra.mrb[0].mxu0 %v948
        %v987 = vpop.f32.mrb[0].mxu0
        %v988 = vadd.f32 0.0, %v987
        %v989 = vpop.f32.mrb[0].mxu0
        %v990 = vpop.f32.mrb[0].mxu0
        %v991 = vadd.f32 0.0, %v990
        %v992 = vpop.f32.mrb[0].mxu0
        %993 = vdwg.mxu0
        %v994 = vmul.f32 %v988, 0.17677669
        %v995 = vmul.f32 %v991, 0.17677669
        %v996 = vsel %vm872, %v994, -inf
        %997 = vmax.xlane.f32.xlu0 %v996
        %v998 = vpop.xlane.xlu0 %997
        %v999 = vsel %vm872, %v995, -inf
        %1000 = vmax.xlane.f32.xlu0 %v999
        %v1001 = vpop.xlane.xlu0 %1000
        %v1002 = vsub.f32 %v994, %v998
        %v1003 = vsub.f32 %v995, %v1001
        %v1004 = vmul.f32 %v1002, 1.442695
        %v1005 = vpow.pop %v1004
        %v1006 = vmul.f32 %v1003, 1.442695
        %v1007 = vpow.pop %v1006
        %v1008 = vsel %vm872, %v1005, 0.0
        %1009 = vadd.xlane.f32.xlu0 %v1008
        %v1010 = vpop.xlane.xlu0 %1009
        %v1011 = vsel %vm872, %v1007, 0.0
        %1012 = vadd.xlane.f32.xlu0 %v1011
        %v1013 = vpop.xlane.xlu0 %1012
        %v1014 = vrcp.pop %v1010
        %v1015 = vmul.f32 %v1005, %v1014
        %v1016 = vrcp.pop %v1013
        %v1017 = vmul.f32 %v1007, %v1016
        %v1018 = vpack.c.bf16 %v1017, %v1015
        %1020 = vrot.lane.b32.xlu0 %v821, 96
        %v1021 = vpop.permute.xlu0 %1020
        %v1024 = vsel %vm872, %v1018, 0
        %1026 = vmatprep.subr.bf16.mxu0 0
        %1027 = vmatpush1.bf16.msra.mxu0 %v1021
        %1028 = vmatprep.subr.bf16.mxu0 0
        %1029 = vmatpush1.bf16.msra.mxu0 0
        %1030 = vmatprep.subr.bf16.mxu0 0
        %1031 = vmatpush1.bf16.msra.mxu0 0
        %1032 = vmatprep.subr.bf16.mxu0 0
        %1033 = vmatpush1.bf16.msra.mxu0 0
        %1034 = vmatprep.subr.bf16.mxu0 0
        %1035 = vmatpush1.bf16.msra.mxu0 0
        %1036 = vmatprep.subr.bf16.mxu0 0
        %1037 = vmatpush1.bf16.msra.mxu0 0
        %1038 = vmatprep.subr.bf16.mxu0 0
        %1039 = vmatpush1.bf16.msra.mxu0 0
        %1040 = vmatprep.subr.bf16.mxu0 0
        %1041 = vmatpush1.bf16.msra.mxu0 0
        %1042 = vmatprep.subr.bf16.mxu0 0
        %1043 = vmatpush1.bf16.msra.mxu0 0
        %1044 = vmatprep.subr.bf16.mxu0 0
        %1045 = vmatpush1.bf16.msra.mxu0 0
        %1046 = vmatprep.subr.bf16.mxu0 0
        %1047 = vmatpush1.bf16.msra.mxu0 0
        %1048 = vmatprep.subr.bf16.mxu0 0
        %1049 = vmatpush1.bf16.msra.mxu0 0
        %1050 = vmatprep.subr.bf16.mxu0 0
        %1051 = vmatpush1.bf16.msra.mxu0 0
        %1052 = vmatprep.subr.bf16.mxu0 0
        %1053 = vmatpush1.bf16.msra.mxu0 0
        %1054 = vmatprep.subr.bf16.mxu0 0
        %1055 = vmatpush1.bf16.msra.mxu0 0
        %1056 = vmatprep.subr.bf16.mxu0 0
        %1057 = vmatpush1.bf16.msra.mxu0 0
        %1058 = vmatprep.mubr.bf16.mxu0 0
        %1059 = vmatmul.mubr.bf16.gmra.mrb[0].mxu0 %v1024
        %v1060 = vpop.f32.mrb[0].mxu0
        %v1061 = vadd.f32 0.0, %v1060
        %v1062 = vpop.f32.mrb[0].mxu0
        %v1063 = vpop.f32.mrb[0].mxu0
        %v1064 = vadd.f32 0.0, %v1063
        %v1065 = vpop.f32.mrb[0].mxu0
        %1066 = vdwg.mxu0
        %v1067 = vpack.c.bf16 %v1064, %v1061
        %v1072 = vunpack.c.l.b16 %v491
        %v1073 = vunpack.c.l.b16 %v492
        %v1074 = vunpack.c.l.b16 %v493
        %v1075 = vunpack.c.l.b16 %v494
        %v1076 = vpack.c.b16 %v1073, %v1072
        %v1077 = vpack.c.b16 %v1075, %v1074
        %v1081 = vsel %vm822, %v1067, 0
        %1083 = vmatprep.subr.bf16.mxu0 0
        %1084 = vmatpush1.bf16.msra.mxu0 %v1076
        %1085 = vmatprep.subr.bf16.mxu0 0
        %1086 = vmatpush1.bf16.msra.mxu0 %v1077
        %1087 = vmatprep.subr.bf16.mxu0 0
        %1088 = vmatpush1.bf16.msra.mxu0 0
        %1089 = vmatprep.subr.bf16.mxu0 0
        %1090 = vmatpush1.bf16.msra.mxu0 0
        %1091 = vmatprep.subr.bf16.mxu0 0
        %1092 = vmatpush1.bf16.msra.mxu0 0
        %1093 = vmatprep.subr.bf16.mxu0 0
        %1094 = vmatpush1.bf16.msra.mxu0 0
        %1095 = vmatprep.subr.bf16.mxu0 0
        %1096 = vmatpush1.bf16.msra.mxu0 0
        %1097 = vmatprep.subr.bf16.mxu0 0
        %1098 = vmatpush1.bf16.msra.mxu0 0
        %1099 = vmatprep.subr.bf16.mxu0 0
        %1100 = vmatpush1.bf16.msra.mxu0 0
        %1101 = vmatprep.subr.bf16.mxu0 0
        %1102 = vmatpush1.bf16.msra.mxu0 0
        %1103 = vmatprep.subr.bf16.mxu0 0
        %1104 = vmatpush1.bf16.msra.mxu0 0
        %1105 = vmatprep.subr.bf16.mxu0 0
        %1106 = vmatpush1.bf16.msra.mxu0 0
        %1107 = vmatprep.subr.bf16.mxu0 0
        %1108 = vmatpush1.bf16.msra.mxu0 0
        %1109 = vmatprep.subr.bf16.mxu0 0
        %1110 = vmatpush1.bf16.msra.mxu0 0
        %1111 = vmatprep.subr.bf16.mxu0 0
        %1112 = vmatpush1.bf16.msra.mxu0 0
        %1113 = vmatprep.subr.bf16.mxu0 0
        %1114 = vmatpush1.bf16.msra.mxu0 0
        %1115 = vmatprep.mubr.bf16.mxu0 0
        %1116 = vmatmul.mubr.bf16.gmra.mrb[0].mxu0 %v1081
        %v1117 = vpop.f32.mrb[0].mxu0
        %v1118 = vadd.f32 0.0, %v1117
        %v1119 = vpop.f32.mrb[0].mxu0
        %v1120 = vpop.f32.mrb[0].mxu0
        %v1121 = vadd.f32 0.0, %v1120
        %v1122 = vpop.f32.mrb[0].mxu0
        %1123 = vdwg.mxu0
        %v1128 = vunpack.c.l.b16 %v487
        %v1129 = vunpack.c.l.b16 %v488
        %v1130 = vunpack.c.l.b16 %v489
        %v1131 = vunpack.c.l.b16 %v490
        %v1132 = vpack.c.b16 %v1129, %v1128
        %v1133 = vpack.c.b16 %v1131, %v1130
        %v1137 = vsel %vm822, %v940, 0
        %1139 = vmatprep.subr.bf16.mxu0 0
        %1140 = vmatpush1.bf16.msra.mxu0 %v1132
        %1141 = vmatprep.subr.bf16.mxu0 0
        %1142 = vmatpush1.bf16.msra.mxu0 %v1133
        %1143 = vmatprep.subr.bf16.mxu0 0
        %1144 = vmatpush1.bf16.msra.mxu0 0
        %1145 = vmatprep.subr.bf16.mxu0 0
        %1146 = vmatpush1.bf16.msra.mxu0 0
        %1147 = vmatprep.subr.bf16.mxu0 0
        %1148 = vmatpush1.bf16.msra.mxu0 0
        %1149 = vmatprep.subr.bf16.mxu0 0
        %1150 = vmatpush1.bf16.msra.mxu0 0
        %1151 = vmatprep.subr.bf16.mxu0 0
        %1152 = vmatpush1.bf16.msra.mxu0 0
        %1153 = vmatprep.subr.bf16.mxu0 0
        %1154 = vmatpush1.bf16.msra.mxu0 0
        %1155 = vmatprep.subr.bf16.mxu0 0
        %1156 = vmatpush1.bf16.msra.mxu0 0
        %1157 = vmatprep.subr.bf16.mxu0 0
        %1158 = vmatpush1.bf16.msra.mxu0 0
        %1159 = vmatprep.subr.bf16.mxu0 0
        %1160 = vmatpush1.bf16.msra.mxu0 0
        %1161 = vmatprep.subr.bf16.mxu0 0
        %1162 = vmatpush1.bf16.msra.mxu0 0
        %1163 = vmatprep.subr.bf16.mxu0 0
        %1164 = vmatpush1.bf16.msra.mxu0 0
        %1165 = vmatprep.subr.bf16.mxu0 0
        %1166 = vmatpush1.bf16.msra.mxu0 0
        %1167 = vmatprep.subr.bf16.mxu0 0
        %1168 = vmatpush1.bf16.msra.mxu0 0
        %1169 = vmatprep.subr.bf16.mxu0 0
        %1170 = vmatpush1.bf16.msra.mxu0 0
        %1171 = vmatprep.mubr.bf16.mxu0 0
        %1172 = vmatmul.mubr.bf16.gmra.mrb[0].mxu0 %v1137
        %v1173 = vpop.f32.mrb[0].mxu0
        %v1174 = vadd.f32 %v1118, %v1173
        %v1175 = vpop.f32.mrb[0].mxu0
        %v1176 = vpop.f32.mrb[0].mxu0
        %v1177 = vadd.f32 %v1121, %v1176
        %v1178 = vpop.f32.mrb[0].mxu0
        %1179 = vdwg.mxu0
        %1180 = vrot.lane.b32.xlu0 %v819, 64
        %v1181 = vpop.permute.xlu0 %1180
        %1182 = vrot.lane.b32.xlu0 %v820, 64
        %v1183 = vpop.permute.xlu0 %1182
        %v1185 = vsel %vm822, %v1181, 0
        %v1188 = vsel %vm822, %v1183, 0
        %1190 = vmatprep.subr.bf16.mxu0 0
        %1191 = vmatpush1.bf16.xpose.msra.mxu0 %v1188
        %1192 = vmatprep.subr.bf16.mxu0 0
        %1193 = vmatpush1.bf16.xpose.msra.mxu0 0
        %1194 = vmatprep.subr.bf16.mxu0 0
        %1195 = vmatpush1.bf16.xpose.msra.mxu0 0
        %1196 = vmatprep.subr.bf16.mxu0 0
        %1197 = vmatpush1.bf16.xpose.msra.mxu0 0
        %1198 = vmatprep.subr.bf16.mxu0 0
        %1199 = vmatpush1.bf16.xpose.msra.mxu0 0
        %1200 = vmatprep.subr.bf16.mxu0 0
        %1201 = vmatpush1.bf16.xpose.msra.mxu0 0
        %1202 = vmatprep.subr.bf16.mxu0 0
        %1203 = vmatpush1.bf16.xpose.msra.mxu0 0
        %1204 = vmatprep.subr.bf16.mxu0 0
        %1205 = vmatpush1.bf16.xpose.msra.mxu0 0
        %1206 = vmatprep.subr.bf16.mxu0 0
        %1207 = vmatpush1.bf16.xpose.msra.mxu0 0
        %1208 = vmatprep.subr.bf16.mxu0 0
        %1209 = vmatpush1.bf16.xpose.msra.mxu0 0
        %1210 = vmatprep.subr.bf16.mxu0 0
        %1211 = vmatpush1.bf16.xpose.msra.mxu0 0
        %1212 = vmatprep.subr.bf16.mxu0 0
        %1213 = vmatpush1.bf16.xpose.msra.mxu0 0
        %1214 = vmatprep.subr.bf16.mxu0 0
        %1215 = vmatpush1.bf16.xpose.msra.mxu0 0
        %1216 = vmatprep.subr.bf16.mxu0 0
        %1217 = vmatpush1.bf16.xpose.msra.mxu0 0
        %1218 = vmatprep.subr.bf16.mxu0 0
        %1219 = vmatpush1.bf16.xpose.msra.mxu0 0
        %1220 = vmatprep.subr.bf16.mxu0 0
        %1221 = vmatpush1.bf16.xpose.msra.mxu0 0
        %1222 = vmatprep.mubr.bf16.mxu0 0
        %1223 = vmatmul.mubr.bf16.gmra.mrb[0].mxu0 %v1185
        %v1224 = vpop.f32.mrb[0].mxu0
        %v1225 = vadd.f32 0.0, %v1224
        %v1226 = vpop.f32.mrb[0].mxu0
        %v1227 = vpop.f32.mrb[0].mxu0
        %v1228 = vadd.f32 0.0, %v1227
        %v1229 = vpop.f32.mrb[0].mxu0
        %1230 = vdwg.mxu0
        %v1231 = vmul.f32 %v1225, 0.17677669
        %v1232 = vmul.f32 %v1228, 0.17677669
        %v1233 = vsel %vm872, %v1231, -inf
        %1234 = vmax.xlane.f32.xlu0 %v1233
        %v1235 = vpop.xlane.xlu0 %1234
        %v1236 = vsel %vm872, %v1232, -inf
        %1237 = vmax.xlane.f32.xlu0 %v1236
        %v1238 = vpop.xlane.xlu0 %1237
        %v1239 = vsub.f32 %v1231, %v1235
        %v1240 = vsub.f32 %v1232, %v1238
        %v1241 = vmul.f32 %v1239, 1.442695
        %v1242 = vpow.pop %v1241
        %v1243 = vmul.f32 %v1240, 1.442695
        %v1244 = vpow.pop %v1243
        %v1245 = vsel %vm872, %v1242, 0.0
        %1246 = vadd.xlane.f32.xlu0 %v1245
        %v1247 = vpop.xlane.xlu0 %1246
        %v1248 = vsel %vm872, %v1244, 0.0
        %1249 = vadd.xlane.f32.xlu0 %v1248
        %v1250 = vpop.xlane.xlu0 %1249
        %v1251 = vrcp.pop %v1247
        %v1252 = vmul.f32 %v1242, %v1251
        %v1253 = vrcp.pop %v1250
        %v1254 = vmul.f32 %v1244, %v1253
        %v1255 = vpack.c.bf16 %v1254, %v1252
        %1256 = vrot.lane.b32.xlu0 %v821, 64
        %v1257 = vpop.permute.xlu0 %1256
        %v1260 = vsel %vm872, %v1255, 0
        %1262 = vmatprep.subr.bf16.mxu0 0
        %1263 = vmatpush1.bf16.msra.mxu0 %v1257
        %1264 = vmatprep.subr.bf16.mxu0 0
        %1265 = vmatpush1.bf16.msra.mxu0 0
        %1266 = vmatprep.subr.bf16.mxu0 0
        %1267 = vmatpush1.bf16.msra.mxu0 0
        %1268 = vmatprep.subr.bf16.mxu0 0
        %1269 = vmatpush1.bf16.msra.mxu0 0
        %1270 = vmatprep.subr.bf16.mxu0 0
        %1271 = vmatpush1.bf16.msra.mxu0 0
        %1272 = vmatprep.subr.bf16.mxu0 0
        %1273 = vmatpush1.bf16.msra.mxu0 0
        %1274 = vmatprep.subr.bf16.mxu0 0
        %1275 = vmatpush1.bf16.msra.mxu0 0
        %1276 = vmatprep.subr.bf16.mxu0 0
        %1277 = vmatpush1.bf16.msra.mxu0 0
        %1278 = vmatprep.subr.bf16.mxu0 0
        %1279 = vmatpush1.bf16.msra.mxu0 0
        %1280 = vmatprep.subr.bf16.mxu0 0
        %1281 = vmatpush1.bf16.msra.mxu0 0
        %1282 = vmatprep.subr.bf16.mxu0 0
        %1283 = vmatpush1.bf16.msra.mxu0 0
        %1284 = vmatprep.subr.bf16.mxu0 0
        %1285 = vmatpush1.bf16.msra.mxu0 0
        %1286 = vmatprep.subr.bf16.mxu0 0
        %1287 = vmatpush1.bf16.msra.mxu0 0
        %1288 = vmatprep.subr.bf16.mxu0 0
        %1289 = vmatpush1.bf16.msra.mxu0 0
        %1290 = vmatprep.subr.bf16.mxu0 0
        %1291 = vmatpush1.bf16.msra.mxu0 0
        %1292 = vmatprep.subr.bf16.mxu0 0
        %1293 = vmatpush1.bf16.msra.mxu0 0
        %1294 = vmatprep.mubr.bf16.mxu0 0
        %1295 = vmatmul.mubr.bf16.gmra.mrb[0].mxu0 %v1260
        %v1296 = vpop.f32.mrb[0].mxu0
        %v1297 = vadd.f32 0.0, %v1296
        %v1298 = vpop.f32.mrb[0].mxu0
        %v1299 = vpop.f32.mrb[0].mxu0
        %v1300 = vadd.f32 0.0, %v1299
        %v1301 = vpop.f32.mrb[0].mxu0
        %1302 = vdwg.mxu0
        %v1303 = vpack.c.bf16 %v1300, %v1297
        %v1308 = vunpack.c.l.b16 %v495
        %v1309 = vunpack.c.l.b16 %v496
        %v1310 = vunpack.c.l.b16 %v497
        %v1311 = vunpack.c.l.b16 %v498
        %v1312 = vpack.c.b16 %v1309, %v1308
        %v1313 = vpack.c.b16 %v1311, %v1310
        %v1317 = vsel %vm822, %v1303, 0
        %1319 = vmatprep.subr.bf16.mxu0 0
        %1320 = vmatpush1.bf16.msra.mxu0 %v1312
        %1321 = vmatprep.subr.bf16.mxu0 0
        %1322 = vmatpush1.bf16.msra.mxu0 %v1313
        %1323 = vmatprep.subr.bf16.mxu0 0
        %1324 = vmatpush1.bf16.msra.mxu0 0
        %1325 = vmatprep.subr.bf16.mxu0 0
        %1326 = vmatpush1.bf16.msra.mxu0 0
        %1327 = vmatprep.subr.bf16.mxu0 0
        %1328 = vmatpush1.bf16.msra.mxu0 0
        %1329 = vmatprep.subr.bf16.mxu0 0
        %1330 = vmatpush1.bf16.msra.mxu0 0
        %1331 = vmatprep.subr.bf16.mxu0 0
        %1332 = vmatpush1.bf16.msra.mxu0 0
        %1333 = vmatprep.subr.bf16.mxu0 0
        %1334 = vmatpush1.bf16.msra.mxu0 0
        %1335 = vmatprep.subr.bf16.mxu0 0
        %1336 = vmatpush1.bf16.msra.mxu0 0
        %1337 = vmatprep.subr.bf16.mxu0 0
        %1338 = vmatpush1.bf16.msra.mxu0 0
        %1339 = vmatprep.subr.bf16.mxu0 0
        %1340 = vmatpush1.bf16.msra.mxu0 0
        %1341 = vmatprep.subr.bf16.mxu0 0
        %1342 = vmatpush1.bf16.msra.mxu0 0
        %1343 = vmatprep.subr.bf16.mxu0 0
        %1344 = vmatpush1.bf16.msra.mxu0 0
        %1345 = vmatprep.subr.bf16.mxu0 0
        %1346 = vmatpush1.bf16.msra.mxu0 0
        %1347 = vmatprep.subr.bf16.mxu0 0
        %1348 = vmatpush1.bf16.msra.mxu0 0
        %1349 = vmatprep.subr.bf16.mxu0 0
        %1350 = vmatpush1.bf16.msra.mxu0 0
        %1351 = vmatprep.mubr.bf16.mxu0 0
        %1352 = vmatmul.mubr.bf16.gmra.mrb[0].mxu0 %v1317
        %v1353 = vpop.f32.mrb[0].mxu0
        %v1354 = vadd.f32 0.0, %v1353
        %v1355 = vpop.f32.mrb[0].mxu0
        %v1356 = vpop.f32.mrb[0].mxu0
        %v1357 = vadd.f32 0.0, %v1356
        %v1358 = vpop.f32.mrb[0].mxu0
        %1359 = vdwg.mxu0
        %v1360 = vadd.f32 %v1174, %v1354
        %v1361 = vadd.f32 %v1177, %v1357
        %1362 = vrot.lane.b32.xlu0 %v819, 32
        %v1363 = vpop.permute.xlu0 %1362
        %1364 = vrot.lane.b32.xlu0 %v820, 32
        %v1365 = vpop.permute.xlu0 %1364
        %v1367 = vsel %vm822, %v1363, 0
        %v1370 = vsel %vm822, %v1365, 0
        %1372 = vmatprep.subr.bf16.mxu0 0
        %1373 = vmatpush1.bf16.xpose.msra.mxu0 %v1370
        %1374 = vmatprep.subr.bf16.mxu0 0
        %1375 = vmatpush1.bf16.xpose.msra.mxu0 0
        %1376 = vmatprep.subr.bf16.mxu0 0
        %1377 = vmatpush1.bf16.xpose.msra.mxu0 0
        %1378 = vmatprep.subr.bf16.mxu0 0
        %1379 = vmatpush1.bf16.xpose.msra.mxu0 0
        %1380 = vmatprep.subr.bf16.mxu0 0
        %1381 = vmatpush1.bf16.xpose.msra.mxu0 0
        %1382 = vmatprep.subr.bf16.mxu0 0
        %1383 = vmatpush1.bf16.xpose.msra.mxu0 0
        %1384 = vmatprep.subr.bf16.mxu0 0
        %1385 = vmatpush1.bf16.xpose.msra.mxu0 0
        %1386 = vmatprep.subr.bf16.mxu0 0
        %1387 = vmatpush1.bf16.xpose.msra.mxu0 0
        %1388 = vmatprep.subr.bf16.mxu0 0
        %1389 = vmatpush1.bf16.xpose.msra.mxu0 0
        %1390 = vmatprep.subr.bf16.mxu0 0
        %1391 = vmatpush1.bf16.xpose.msra.mxu0 0
        %1392 = vmatprep.subr.bf16.mxu0 0
        %1393 = vmatpush1.bf16.xpose.msra.mxu0 0
        %1394 = vmatprep.subr.bf16.mxu0 0
        %1395 = vmatpush1.bf16.xpose.msra.mxu0 0
        %1396 = vmatprep.subr.bf16.mxu0 0
        %1397 = vmatpush1.bf16.xpose.msra.mxu0 0
        %1398 = vmatprep.subr.bf16.mxu0 0
        %1399 = vmatpush1.bf16.xpose.msra.mxu0 0
        %1400 = vmatprep.subr.bf16.mxu0 0
        %1401 = vmatpush1.bf16.xpose.msra.mxu0 0
        %1402 = vmatprep.subr.bf16.mxu0 0
        %1403 = vmatpush1.bf16.xpose.msra.mxu0 0
        %1404 = vmatprep.mubr.bf16.mxu0 0
        %1405 = vmatmul.mubr.bf16.gmra.mrb[0].mxu0 %v1367
        %v1406 = vpop.f32.mrb[0].mxu0
        %v1407 = vadd.f32 0.0, %v1406
        %v1408 = vpop.f32.mrb[0].mxu0
        %v1409 = vpop.f32.mrb[0].mxu0
        %v1410 = vadd.f32 0.0, %v1409
        %v1411 = vpop.f32.mrb[0].mxu0
        %1412 = vdwg.mxu0
        %v1413 = vmul.f32 %v1407, 0.17677669
        %v1414 = vmul.f32 %v1410, 0.17677669
        %v1415 = vsel %vm872, %v1413, -inf
        %1416 = vmax.xlane.f32.xlu0 %v1415
        %v1417 = vpop.xlane.xlu0 %1416
        %v1418 = vsel %vm872, %v1414, -inf
        %1419 = vmax.xlane.f32.xlu0 %v1418
        %v1420 = vpop.xlane.xlu0 %1419
        %v1421 = vsub.f32 %v1413, %v1417
        %v1422 = vsub.f32 %v1414, %v1420
        %v1423 = vmul.f32 %v1421, 1.442695
        %v1424 = vpow.pop %v1423
        %v1425 = vmul.f32 %v1422, 1.442695
        %v1426 = vpow.pop %v1425
        %v1427 = vsel %vm872, %v1424, 0.0
        %1428 = vadd.xlane.f32.xlu0 %v1427
        %v1429 = vpop.xlane.xlu0 %1428
        %v1430 = vsel %vm872, %v1426, 0.0
        %1431 = vadd.xlane.f32.xlu0 %v1430
        %v1432 = vpop.xlane.xlu0 %1431
        %v1433 = vrcp.pop %v1429
        %v1434 = vmul.f32 %v1424, %v1433
        %v1435 = vrcp.pop %v1432
        %v1436 = vmul.f32 %v1426, %v1435
        %v1437 = vpack.c.bf16 %v1436, %v1434
        %1438 = vrot.lane.b32.xlu0 %v821, 32
        %v1439 = vpop.permute.xlu0 %1438
        %v1442 = vsel %vm872, %v1437, 0
        %1444 = vmatprep.subr.bf16.mxu0 0
        %1445 = vmatpush1.bf16.msra.mxu0 %v1439
        %1446 = vmatprep.subr.bf16.mxu0 0
        %1447 = vmatpush1.bf16.msra.mxu0 0
        %1448 = vmatprep.subr.bf16.mxu0 0
        %1449 = vmatpush1.bf16.msra.mxu0 0
        %1450 = vmatprep.subr.bf16.mxu0 0
        %1451 = vmatpush1.bf16.msra.mxu0 0
        %1452 = vmatprep.subr.bf16.mxu0 0
        %1453 = vmatpush1.bf16.msra.mxu0 0
        %1454 = vmatprep.subr.bf16.mxu0 0
        %1455 = vmatpush1.bf16.msra.mxu0 0
        %1456 = vmatprep.subr.bf16.mxu0 0
        %1457 = vmatpush1.bf16.msra.mxu0 0
        %1458 = vmatprep.subr.bf16.mxu0 0
        %1459 = vmatpush1.bf16.msra.mxu0 0
        %1460 = vmatprep.subr.bf16.mxu0 0
        %1461 = vmatpush1.bf16.msra.mxu0 0
        %1462 = vmatprep.subr.bf16.mxu0 0
        %1463 = vmatpush1.bf16.msra.mxu0 0
        %1464 = vmatprep.subr.bf16.mxu0 0
        %1465 = vmatpush1.bf16.msra.mxu0 0
        %1466 = vmatprep.subr.bf16.mxu0 0
        %1467 = vmatpush1.bf16.msra.mxu0 0
        %1468 = vmatprep.subr.bf16.mxu0 0
        %1469 = vmatpush1.bf16.msra.mxu0 0
        %1470 = vmatprep.subr.bf16.mxu0 0
        %1471 = vmatpush1.bf16.msra.mxu0 0
        %1472 = vmatprep.subr.bf16.mxu0 0
        %1473 = vmatpush1.bf16.msra.mxu0 0
        %1474 = vmatprep.subr.bf16.mxu0 0
        %1475 = vmatpush1.bf16.msra.mxu0 0
        %1476 = vmatprep.mubr.bf16.mxu0 0
        %1477 = vmatmul.mubr.bf16.gmra.mrb[0].mxu0 %v1442
        %v1478 = vpop.f32.mrb[0].mxu0
        %v1479 = vadd.f32 0.0, %v1478
        %v1480 = vpop.f32.mrb[0].mxu0
        %v1481 = vpop.f32.mrb[0].mxu0
        %v1482 = vadd.f32 0.0, %v1481
        %v1483 = vpop.f32.mrb[0].mxu0
        %1484 = vdwg.mxu0
        %v1485 = vpack.c.bf16 %v1482, %v1479
        %v1490 = vunpack.c.l.b16 %v499
        %v1491 = vunpack.c.l.b16 %v500
        %v1492 = vunpack.c.l.b16 %v501
        %v1493 = vunpack.c.l.b16 %v502
        %v1494 = vpack.c.b16 %v1491, %v1490
        %v1495 = vpack.c.b16 %v1493, %v1492
        %v1499 = vsel %vm822, %v1485, 0
        %1501 = vmatprep.subr.bf16.mxu0 0
        %1502 = vmatpush1.bf16.msra.mxu0 %v1494
        %1503 = vmatprep.subr.bf16.mxu0 0
        %1504 = vmatpush1.bf16.msra.mxu0 %v1495
        %1505 = vmatprep.subr.bf16.mxu0 0
        %1506 = vmatpush1.bf16.msra.mxu0 0
        %1507 = vmatprep.subr.bf16.mxu0 0
        %1508 = vmatpush1.bf16.msra.mxu0 0
        %1509 = vmatprep.subr.bf16.mxu0 0
        %1510 = vmatpush1.bf16.msra.mxu0 0
        %1511 = vmatprep.subr.bf16.mxu0 0
        %1512 = vmatpush1.bf16.msra.mxu0 0
        %1513 = vmatprep.subr.bf16.mxu0 0
        %1514 = vmatpush1.bf16.msra.mxu0 0
        %1515 = vmatprep.subr.bf16.mxu0 0
        %1516 = vmatpush1.bf16.msra.mxu0 0
        %1517 = vmatprep.subr.bf16.mxu0 0
        %1518 = vmatpush1.bf16.msra.mxu0 0
        %1519 = vmatprep.subr.bf16.mxu0 0
        %1520 = vmatpush1.bf16.msra.mxu0 0
        %1521 = vmatprep.subr.bf16.mxu0 0
        %1522 = vmatpush1.bf16.msra.mxu0 0
        %1523 = vmatprep.subr.bf16.mxu0 0
        %1524 = vmatpush1.bf16.msra.mxu0 0
        %1525 = vmatprep.subr.bf16.mxu0 0
        %1526 = vmatpush1.bf16.msra.mxu0 0
        %1527 = vmatprep.subr.bf16.mxu0 0
        %1528 = vmatpush1.bf16.msra.mxu0 0
        %1529 = vmatprep.subr.bf16.mxu0 0
        %1530 = vmatpush1.bf16.msra.mxu0 0
        %1531 = vmatprep.subr.bf16.mxu0 0
        %1532 = vmatpush1.bf16.msra.mxu0 0
        %1533 = vmatprep.mubr.bf16.mxu0 0
        %1534 = vmatmul.mubr.bf16.gmra.mrb[0].mxu0 %v1499
        %v1535 = vpop.f32.mrb[0].mxu0
        %v1536 = vadd.f32 0.0, %v1535
        %v1537 = vpop.f32.mrb[0].mxu0
        %v1538 = vpop.f32.mrb[0].mxu0
        %v1539 = vadd.f32 0.0, %v1538
        %v1540 = vpop.f32.mrb[0].mxu0
        %1541 = vdwg.mxu0
        %v1542 = vadd.f32 %v1360, %v1536
        %v1543 = vadd.f32 %v1361, %v1539
        %v1544 = vadd.f32 %v452, %v1542
        %v1545 = vadd.f32 %v453, %v1543
        %v1546 = vmul.f32 %v1544, %v1544
        %v1547 = vmul.f32 %v1545, %v1545
        %1548 = vadd.xlane.f32.xlu0 %v1546
        %v1549 = vpop.xlane.xlu0 %1548
        %1550 = vadd.xlane.f32.xlu0 %v1547
        %v1551 = vpop.xlane.xlu0 %1550
        %v1552 = vrsqrt.pop %v1549
        %v1553 = vmul.f32 %v1549, %v1552
        %vm1554 = vcmp.eq.f32.partialorder %v1549, inf
        %v1555 = vsel %vm1554, %v1549, %v1553
        %vm1556 = vcmp.eq.f32.partialorder %v1549, 0.0
        %v1557 = vand.u32 %v1549, 2147483648
        %v1558 = vsel %vm1556, %v1557, %v1555
        %v1559 = vrsqrt.pop %v1551
        %v1560 = vmul.f32 %v1551, %v1559
        %vm1561 = vcmp.eq.f32.partialorder %v1551, inf
        %v1562 = vsel %vm1561, %v1551, %v1560
        %vm1563 = vcmp.eq.f32.partialorder %v1551, 0.0
        %v1564 = vand.u32 %v1551, 2147483648
        %v1565 = vsel %vm1563, %v1564, %v1562
        %v1566 = vmax.f32 %v1558, 1e-12
        %v1567 = vmax.f32 %v1565, 1e-12
        %v1568 = vrcp.pop %v1566
        %v1569 = vmul.f32 11.313708, %v1568
        %v1570 = vrcp.pop %v1567
        %v1571 = vmul.f32 11.313708, %v1570
        %v1572 = vmul.f32 %v1544, %v1569
        %v1573 = vmul.f32 %v1545, %v1571
        %v1575 = vlaneseq
        %v1576 = vshrl.u32 %v1575, 7
        %v1577 = vsub.s32 0, %v1576
        %v1578 = vrot.slane %v503, %v1577
        %v1580 = vmul.f32 %v1572, %v1578
        %v1581 = vmul.f32 %v1573, %v1578
        %v1582 = vpack.c.bf16 %v1581, %v1580
        %v1584 = vlaneseq
        %v1585 = vshrl.u32 %v1584, 7
        %v1586 = vsub.s32 0, %v1585
        %v1587 = vrot.slane %v536, %v1586
        %v1588 = vlaneseq
        %v1589 = vshrl.u32 %v1588, 7
        %v1590 = vsub.s32 1, %v1589
        %v1591 = vrot.slane %v536, %v1590
        %v1592 = vlaneseq
        %v1593 = vshrl.u32 %v1592, 7
        %v1594 = vsub.s32 2, %v1593
        %v1595 = vrot.slane %v536, %v1594
        %v1596 = vlaneseq
        %v1597 = vshrl.u32 %v1596, 7
        %v1598 = vsub.s32 3, %v1597
        %v1599 = vrot.slane %v536, %v1598
        %v1636 = vunpack.c.l.b16 %v504
        %v1637 = vunpack.c.h.b16 %v504
        %v1638 = vunpack.c.l.b16 %v505
        %v1639 = vunpack.c.h.b16 %v505
        %v1640 = vunpack.c.l.b16 %v506
        %v1641 = vunpack.c.h.b16 %v506
        %v1642 = vunpack.c.l.b16 %v507
        %v1643 = vunpack.c.h.b16 %v507
        %v1644 = vunpack.c.l.b16 %v508
        %v1645 = vunpack.c.h.b16 %v508
        %v1646 = vunpack.c.l.b16 %v509
        %v1647 = vunpack.c.h.b16 %v509
        %v1648 = vunpack.c.l.b16 %v510
        %v1649 = vunpack.c.h.b16 %v510
        %v1650 = vunpack.c.l.b16 %v511
        %v1651 = vunpack.c.h.b16 %v511
        %v1652 = vunpack.c.l.b16 %v512
        %v1653 = vunpack.c.h.b16 %v512
        %v1654 = vunpack.c.l.b16 %v513
        %v1655 = vunpack.c.h.b16 %v513
        %v1656 = vunpack.c.l.b16 %v514
        %v1657 = vunpack.c.h.b16 %v514
        %v1658 = vunpack.c.l.b16 %v515
        %v1659 = vunpack.c.h.b16 %v515
        %v1660 = vunpack.c.l.b16 %v516
        %v1661 = vunpack.c.h.b16 %v516
        %v1662 = vunpack.c.l.b16 %v517
        %v1663 = vunpack.c.h.b16 %v517
        %v1664 = vunpack.c.l.b16 %v518
        %v1665 = vunpack.c.h.b16 %v518
        %v1666 = vunpack.c.l.b16 %v519
        %v1667 = vunpack.c.h.b16 %v519
        %v1668 = vunpack.c.l.b16 %v520
        %v1669 = vunpack.c.h.b16 %v520
        %v1670 = vunpack.c.l.b16 %v521
        %v1671 = vunpack.c.h.b16 %v521
        %v1672 = vunpack.c.l.b16 %v522
        %v1673 = vunpack.c.h.b16 %v522
        %v1674 = vunpack.c.l.b16 %v523
        %v1675 = vunpack.c.h.b16 %v523
        %v1676 = vunpack.c.l.b16 %v524
        %v1677 = vunpack.c.h.b16 %v524
        %v1678 = vunpack.c.l.b16 %v525
        %v1679 = vunpack.c.h.b16 %v525
        %v1680 = vunpack.c.l.b16 %v526
        %v1681 = vunpack.c.h.b16 %v526
        %v1682 = vunpack.c.l.b16 %v527
        %v1683 = vunpack.c.h.b16 %v527
        %v1684 = vunpack.c.l.b16 %v528
        %v1685 = vunpack.c.h.b16 %v528
        %v1686 = vunpack.c.l.b16 %v529
        %v1687 = vunpack.c.h.b16 %v529
        %v1688 = vunpack.c.l.b16 %v530
        %v1689 = vunpack.c.h.b16 %v530
        %v1690 = vunpack.c.l.b16 %v531
        %v1691 = vunpack.c.h.b16 %v531
        %v1692 = vunpack.c.l.b16 %v532
        %v1693 = vunpack.c.h.b16 %v532
        %v1694 = vunpack.c.l.b16 %v533
        %v1695 = vunpack.c.h.b16 %v533
        %v1696 = vunpack.c.l.b16 %v534
        %v1697 = vunpack.c.h.b16 %v534
        %v1698 = vunpack.c.l.b16 %v535
        %v1699 = vunpack.c.h.b16 %v535
        %v1700 = vpack.c.b16 %v1640, %v1636
        %v1701 = vpack.c.b16 %v1641, %v1637
        %v1702 = vpack.c.b16 %v1642, %v1638
        %v1703 = vpack.c.b16 %v1643, %v1639
        %v1704 = vpack.c.b16 %v1648, %v1644
        %v1705 = vpack.c.b16 %v1649, %v1645
        %v1706 = vpack.c.b16 %v1650, %v1646
        %v1707 = vpack.c.b16 %v1651, %v1647
        %v1708 = vpack.c.b16 %v1656, %v1652
        %v1709 = vpack.c.b16 %v1657, %v1653
        %v1710 = vpack.c.b16 %v1658, %v1654
        %v1711 = vpack.c.b16 %v1659, %v1655
        %v1712 = vpack.c.b16 %v1664, %v1660
        %v1713 = vpack.c.b16 %v1665, %v1661
        %v1714 = vpack.c.b16 %v1666, %v1662
        %v1715 = vpack.c.b16 %v1667, %v1663
        %v1716 = vpack.c.b16 %v1672, %v1668
        %v1717 = vpack.c.b16 %v1673, %v1669
        %v1718 = vpack.c.b16 %v1674, %v1670
        %v1719 = vpack.c.b16 %v1675, %v1671
        %v1720 = vpack.c.b16 %v1680, %v1676
        %v1721 = vpack.c.b16 %v1681, %v1677
        %v1722 = vpack.c.b16 %v1682, %v1678
        %v1723 = vpack.c.b16 %v1683, %v1679
        %v1724 = vpack.c.b16 %v1688, %v1684
        %v1725 = vpack.c.b16 %v1689, %v1685
        %v1726 = vpack.c.b16 %v1690, %v1686
        %v1727 = vpack.c.b16 %v1691, %v1687
        %v1728 = vpack.c.b16 %v1696, %v1692
        %v1729 = vpack.c.b16 %v1697, %v1693
        %v1730 = vpack.c.b16 %v1698, %v1694
        %v1731 = vpack.c.b16 %v1699, %v1695
        %1764 = vmatprep.subr.bf16.mxu0 %v1701
        %1765 = vmatpush1.bf16.msra.mxu0 %v1700
        %1766 = vmatprep.subr.bf16.mxu0 %v1705
        %1767 = vmatpush1.bf16.msra.mxu0 %v1704
        %1768 = vmatprep.subr.bf16.mxu0 %v1709
        %1769 = vmatpush1.bf16.msra.mxu0 %v1708
        %1770 = vmatprep.subr.bf16.mxu0 %v1713
        %1771 = vmatpush1.bf16.msra.mxu0 %v1712
        %1772 = vmatprep.subr.bf16.mxu0 %v1717
        %1773 = vmatpush1.bf16.msra.mxu0 %v1716
        %1774 = vmatprep.subr.bf16.mxu0 %v1721
        %1775 = vmatpush1.bf16.msra.mxu0 %v1720
        %1776 = vmatprep.subr.bf16.mxu0 %v1725
        %1777 = vmatpush1.bf16.msra.mxu0 %v1724
        %1778 = vmatprep.subr.bf16.mxu0 %v1729
        %1779 = vmatpush1.bf16.msra.mxu0 %v1728
        %1780 = vmatprep.subr.bf16.mxu0 0
        %1781 = vmatpush1.bf16.msra.mxu0 0
        %1782 = vmatprep.subr.bf16.mxu0 0
        %1783 = vmatpush1.bf16.msra.mxu0 0
        %1784 = vmatprep.subr.bf16.mxu0 0
        %1785 = vmatpush1.bf16.msra.mxu0 0
        %1786 = vmatprep.subr.bf16.mxu0 0
        %1787 = vmatpush1.bf16.msra.mxu0 0
        %1788 = vmatprep.subr.bf16.mxu0 0
        %1789 = vmatpush1.bf16.msra.mxu0 0
        %1790 = vmatprep.subr.bf16.mxu0 0
        %1791 = vmatpush1.bf16.msra.mxu0 0
        %1792 = vmatprep.subr.bf16.mxu0 0
        %1793 = vmatpush1.bf16.msra.mxu0 0
        %1794 = vmatprep.subr.bf16.mxu0 0
        %1795 = vmatpush1.bf16.msra.mxu0 0
        %1796 = vmatprep.mubr.bf16.mxu0 0
        %1797 = vmatmul.mubr.bf16.gmra.mrb[0].mxu0 %v1582
        %v1798 = vpop.f32.mrb[0].mxu0
        %v1799 = vadd.f32 %v1587, %v1798
        %v1800 = vpop.f32.mrb[0].mxu0
        %v1801 = vadd.f32 %v1591, %v1800
        %v1802 = vpop.f32.mrb[0].mxu0
        %v1803 = vadd.f32 %v1587, %v1802
        %v1804 = vpop.f32.mrb[0].mxu0
        %v1805 = vadd.f32 %v1591, %v1804
        %1806 = vdwg.mxu0
        %1807 = vmatprep.subr.bf16.mxu0 %v1703
        %1808 = vmatpush1.bf16.msra.mxu0 %v1702
        %1809 = vmatprep.subr.bf16.mxu0 %v1707
        %1810 = vmatpush1.bf16.msra.mxu0 %v1706
        %1811 = vmatprep.subr.bf16.mxu0 %v1711
        %1812 = vmatpush1.bf16.msra.mxu0 %v1710
        %1813 = vmatprep.subr.bf16.mxu0 %v1715
        %1814 = vmatpush1.bf16.msra.mxu0 %v1714
        %1815 = vmatprep.subr.bf16.mxu0 %v1719
        %1816 = vmatpush1.bf16.msra.mxu0 %v1718
        %1817 = vmatprep.subr.bf16.mxu0 %v1723
        %1818 = vmatpush1.bf16.msra.mxu0 %v1722
        %1819 = vmatprep.subr.bf16.mxu0 %v1727
        %1820 = vmatpush1.bf16.msra.mxu0 %v1726
        %1821 = vmatprep.subr.bf16.mxu0 %v1731
        %1822 = vmatpush1.bf16.msra.mxu0 %v1730
        %1823 = vmatprep.subr.bf16.mxu0 0
        %1824 = vmatpush1.bf16.msra.mxu0 0
        %1825 = vmatprep.subr.bf16.mxu0 0
        %1826 = vmatpush1.bf16.msra.mxu0 0
        %1827 = vmatprep.subr.bf16.mxu0 0
        %1828 = vmatpush1.bf16.msra.mxu0 0
        %1829 = vmatprep.subr.bf16.mxu0 0
        %1830 = vmatpush1.bf16.msra.mxu0 0
        %1831 = vmatprep.subr.bf16.mxu0 0
        %1832 = vmatpush1.bf16.msra.mxu0 0
        %1833 = vmatprep.subr.bf16.mxu0 0
        %1834 = vmatpush1.bf16.msra.mxu0 0
        %1835 = vmatprep.subr.bf16.mxu0 0
        %1836 = vmatpush1.bf16.msra.mxu0 0
        %1837 = vmatprep.subr.bf16.mxu0 0
        %1838 = vmatpush1.bf16.msra.mxu0 0
        %1839 = vmatprep.mubr.bf16.mxu0 0
        %1840 = vmatmul.mubr.bf16.gmra.mrb[0].mxu0 %v1582
        %v1841 = vpop.f32.mrb[0].mxu0
        %v1842 = vadd.f32 %v1595, %v1841
        %v1843 = vpop.f32.mrb[0].mxu0
        %v1844 = vadd.f32 %v1599, %v1843
        %v1845 = vpop.f32.mrb[0].mxu0
        %v1846 = vadd.f32 %v1595, %v1845
        %v1847 = vpop.f32.mrb[0].mxu0
        %v1848 = vadd.f32 %v1599, %v1847
        %1849 = vdwg.mxu0
        %v1850 = vmul.f32 %v1842, 0.5
        %v1851 = vmul.f32 %v1844, 0.5
        %v1852 = vmul.f32 %v1846, 0.5
        %v1853 = vmul.f32 %v1848, 0.5
        %v1854 = vmul.f32 %v1842, 0.70710677
        %v1855 = vmul.f32 %v1844, 0.70710677
        %v1856 = vmul.f32 %v1846, 0.70710677
        %v1857 = vmul.f32 %v1848, 0.70710677
        %v1858 = vand.u32 2147483647, %v1854
        %v1859 = vand.u32 2147483647, %v1855
        %v1860 = vand.u32 2147483647, %v1856
        %v1861 = vand.u32 2147483647, %v1857
        %v1862 = vmul.f32 %v1858, 0.3275911
        %v1863 = vmul.f32 %v1859, 0.3275911
        %v1864 = vmul.f32 %v1860, 0.3275911
        %v1865 = vmul.f32 %v1861, 0.3275911
        %v1866 = vadd.f32 %v1862, 1.0
        %v1867 = vadd.f32 %v1863, 1.0
        %v1868 = vadd.f32 %v1864, 1.0
        %v1869 = vadd.f32 %v1865, 1.0
        %v1870 = vrcp.pop %v1866
        %v1871 = vmul.f32 1.0, %v1870
        %v1872 = vrcp.pop %v1867
        %v1873 = vmul.f32 1.0, %v1872
        %v1874 = vrcp.pop %v1868
        %v1875 = vmul.f32 1.0, %v1874
        %v1876 = vrcp.pop %v1869
        %v1877 = vmul.f32 1.0, %v1876
        %v1878 = vmul.f32 %v1871, 1.0614054
        %v1879 = vmul.f32 %v1873, 1.0614054
        %v1880 = vmul.f32 %v1875, 1.0614054
        %v1881 = vmul.f32 %v1877, 1.0614054
        %v1882 = vadd.f32 %v1878, -1.4531521
        %v1883 = vadd.f32 %v1879, -1.4531521
        %v1884 = vadd.f32 %v1880, -1.4531521
        %v1885 = vadd.f32 %v1881, -1.4531521
        %v1886 = vmul.f32 %v1882, %v1871
        %v1887 = vmul.f32 %v1883, %v1873
        %v1888 = vmul.f32 %v1884, %v1875
        %v1889 = vmul.f32 %v1885, %v1877
        %v1890 = vadd.f32 %v1886, 1.4214138
        %v1891 = vadd.f32 %v1887, 1.4214138
        %v1892 = vadd.f32 %v1888, 1.4214138
        %v1893 = vadd.f32 %v1889, 1.4214138
        %v1894 = vmul.f32 %v1890, %v1871
        %v1895 = vmul.f32 %v1891, %v1873
        %v1896 = vmul.f32 %v1892, %v1875
        %v1897 = vmul.f32 %v1893, %v1877
        %v1898 = vadd.f32 %v1894, -0.28449672
        %v1899 = vadd.f32 %v1895, -0.28449672
        %v1900 = vadd.f32 %v1896, -0.28449672
        %v1901 = vadd.f32 %v1897, -0.28449672
        %v1902 = vmul.f32 %v1898, %v1871
        %v1903 = vmul.f32 %v1899, %v1873
        %v1904 = vmul.f32 %v1900, %v1875
        %v1905 = vmul.f32 %v1901, %v1877
        %v1906 = vadd.f32 %v1902, 0.2548296
        %v1907 = vadd.f32 %v1903, 0.2548296
        %v1908 = vadd.f32 %v1904, 0.2548296
        %v1909 = vadd.f32 %v1905, 0.2548296
        %v1910 = vmul.f32 %v1906, %v1871
        %v1911 = vmul.f32 %v1907, %v1873
        %v1912 = vmul.f32 %v1908, %v1875
        %v1913 = vmul.f32 %v1909, %v1877
        %v1914 = vsub.f32 0.0, %v1858
        %v1915 = vsub.f32 0.0, %v1859
        %v1916 = vsub.f32 0.0, %v1860
        %v1917 = vsub.f32 0.0, %v1861
        %v1918 = vmul.f32 %v1914, %v1858
        %v1919 = vmul.f32 %v1915, %v1859
        %v1920 = vmul.f32 %v1916, %v1860
        %v1921 = vmul.f32 %v1917, %v1861
        %v1922 = vmul.f32 %v1918, 1.442695
        %v1923 = vpow.pop %v1922
        %v1924 = vmul.f32 %v1919, 1.442695
        %v1925 = vpow.pop %v1924
        %v1926 = vmul.f32 %v1920, 1.442695
        %v1927 = vpow.pop %v1926
        %v1928 = vmul.f32 %v1921, 1.442695
        %v1929 = vpow.pop %v1928
        %v1930 = vmul.f32 %v1910, %v1923
        %v1931 = vmul.f32 %v1911, %v1925
        %v1932 = vmul.f32 %v1912, %v1927
        %v1933 = vmul.f32 %v1913, %v1929
        %v1934 = vsub.f32 1.0, %v1930
        %v1935 = vsub.f32 1.0, %v1931
        %v1936 = vsub.f32 1.0, %v1932
        %v1937 = vsub.f32 1.0, %v1933
        %vm1938 = vcmp.lt.f32.partialorder %v1854, 0.0
        %vm1939 = vcmp.lt.f32.partialorder %v1855, 0.0
        %vm1940 = vcmp.lt.f32.partialorder %v1856, 0.0
        %vm1941 = vcmp.lt.f32.partialorder %v1857, 0.0
        %v1942 = vsub.f32 0.0, %v1934
        %v1943 = vsub.f32 0.0, %v1935
        %v1944 = vsub.f32 0.0, %v1936
        %v1945 = vsub.f32 0.0, %v1937
        %v1946 = vsel %vm1938, %v1942, %v1934
        %v1947 = vsel %vm1939, %v1943, %v1935
        %v1948 = vsel %vm1940, %v1944, %v1936
        %v1949 = vsel %vm1941, %v1945, %v1937
        %v1950 = vadd.f32 %v1946, 1.0
        %v1951 = vadd.f32 %v1947, 1.0
        %v1952 = vadd.f32 %v1948, 1.0
        %v1953 = vadd.f32 %v1949, 1.0
        %v1954 = vmul.f32 %v1850, %v1950
        %v1955 = vmul.f32 %v1851, %v1951
        %v1956 = vmul.f32 %v1852, %v1952
        %v1957 = vmul.f32 %v1853, %v1953
        %v1958 = vmul.f32 %v1954, %v1799
        %v1959 = vmul.f32 %v1955, %v1801
        %v1960 = vmul.f32 %v1956, %v1803
        %v1961 = vmul.f32 %v1957, %v1805
        %v1962 = vpack.c.bf16 %v1960, %v1958
        %v1963 = vpack.c.bf16 %v1961, %v1959
        %v1965 = vlaneseq
        %v1966 = vshrl.u32 %v1965, 7
        %v1967 = vsub.s32 0, %v1966
        %v1968 = vrot.slane %v569, %v1967
        %v2002 = vunpack.c.l.b16 %v537
        %v2003 = vunpack.c.l.b16 %v538
        %v2004 = vunpack.c.l.b16 %v539
        %v2005 = vunpack.c.l.b16 %v540
        %v2006 = vunpack.c.l.b16 %v541
        %v2007 = vunpack.c.l.b16 %v542
        %v2008 = vunpack.c.l.b16 %v543
        %v2009 = vunpack.c.l.b16 %v544
        %v2010 = vunpack.c.l.b16 %v545
        %v2011 = vunpack.c.l.b16 %v546
        %v2012 = vunpack.c.l.b16 %v547
        %v2013 = vunpack.c.l.b16 %v548
        %v2014 = vunpack.c.l.b16 %v549
        %v2015 = vunpack.c.l.b16 %v550
        %v2016 = vunpack.c.l.b16 %v551
        %v2017 = vunpack.c.l.b16 %v552
        %v2018 = vunpack.c.l.b16 %v553
        %v2019 = vunpack.c.l.b16 %v554
        %v2020 = vunpack.c.l.b16 %v555
        %v2021 = vunpack.c.l.b16 %v556
        %v2022 = vunpack.c.l.b16 %v557
        %v2023 = vunpack.c.l.b16 %v558
        %v2024 = vunpack.c.l.b16 %v559
        %v2025 = vunpack.c.l.b16 %v560
        %v2026 = vunpack.c.l.b16 %v561
        %v2027 = vunpack.c.l.b16 %v562
        %v2028 = vunpack.c.l.b16 %v563
        %v2029 = vunpack.c.l.b16 %v564
        %v2030 = vunpack.c.l.b16 %v565
        %v2031 = vunpack.c.l.b16 %v566
        %v2032 = vunpack.c.l.b16 %v567
        %v2033 = vunpack.c.l.b16 %v568
        %v2034 = vpack.c.b16 %v2003, %v2002
        %v2035 = vpack.c.b16 %v2005, %v2004
        %v2036 = vpack.c.b16 %v2007, %v2006
        %v2037 = vpack.c.b16 %v2009, %v2008
        %v2038 = vpack.c.b16 %v2011, %v2010
        %v2039 = vpack.c.b16 %v2013, %v2012
        %v2040 = vpack.c.b16 %v2015, %v2014
        %v2041 = vpack.c.b16 %v2017, %v2016
        %v2042 = vpack.c.b16 %v2019, %v2018
        %v2043 = vpack.c.b16 %v2021, %v2020
        %v2044 = vpack.c.b16 %v2023, %v2022
        %v2045 = vpack.c.b16 %v2025, %v2024
        %v2046 = vpack.c.b16 %v2027, %v2026
        %v2047 = vpack.c.b16 %v2029, %v2028
        %v2048 = vpack.c.b16 %v2031, %v2030
        %v2049 = vpack.c.b16 %v2033, %v2032
        %2066 = vmatprep.subr.bf16.mxu0 0
        %2067 = vmatpush1.bf16.msra.mxu0 %v2034
        %2068 = vmatprep.subr.bf16.mxu0 0
        %2069 = vmatpush1.bf16.msra.mxu0 %v2035
        %2070 = vmatprep.subr.bf16.mxu0 0
        %2071 = vmatpush1.bf16.msra.mxu0 %v2036
        %2072 = vmatprep.subr.bf16.mxu0 0
        %2073 = vmatpush1.bf16.msra.mxu0 %v2037
        %2074 = vmatprep.subr.bf16.mxu0 0
        %2075 = vmatpush1.bf16.msra.mxu0 %v2038
        %2076 = vmatprep.subr.bf16.mxu0 0
        %2077 = vmatpush1.bf16.msra.mxu0 %v2039
        %2078 = vmatprep.subr.bf16.mxu0 0
        %2079 = vmatpush1.bf16.msra.mxu0 %v2040
        %2080 = vmatprep.subr.bf16.mxu0 0
        %2081 = vmatpush1.bf16.msra.mxu0 %v2041
        %2082 = vmatprep.subr.bf16.mxu0 0
        %2083 = vmatpush1.bf16.msra.mxu0 %v2042
        %2084 = vmatprep.subr.bf16.mxu0 0
        %2085 = vmatpush1.bf16.msra.mxu0 %v2043
        %2086 = vmatprep.subr.bf16.mxu0 0
        %2087 = vmatpush1.bf16.msra.mxu0 %v2044
        %2088 = vmatprep.subr.bf16.mxu0 0
        %2089 = vmatpush1.bf16.msra.mxu0 %v2045
        %2090 = vmatprep.subr.bf16.mxu0 0
        %2091 = vmatpush1.bf16.msra.mxu0 %v2046
        %2092 = vmatprep.subr.bf16.mxu0 0
        %2093 = vmatpush1.bf16.msra.mxu0 %v2047
        %2094 = vmatprep.subr.bf16.mxu0 0
        %2095 = vmatpush1.bf16.msra.mxu0 %v2048
        %2096 = vmatprep.subr.bf16.mxu0 0
        %2097 = vmatpush1.bf16.msra.mxu0 %v2049
        %2098 = vmatprep.mubr.bf16.mxu0 %v1963
        %2099 = vmatmul.mubr.bf16.gmra.mrb[0].mxu0 %v1962
        %v2100 = vpop.f32.mrb[0].mxu0
        %v2101 = vadd.f32 %v1968, %v2100
        %v2102 = vpop.f32.mrb[0].mxu0
        %v2103 = vpop.f32.mrb[0].mxu0
        %v2104 = vadd.f32 %v1968, %v2103
        %v2105 = vpop.f32.mrb[0].mxu0
        %2106 = vdwg.mxu0
        %v2107 = vadd.f32 %v1544, %v2101
        %v2108 = vadd.f32 %v1545, %v2104
        %2109 = vst [vmem:[%s450] sm:$0xff] %v2107
        %2110 = vst [vmem:[%s450 + $0x8] sm:$0xff] %v2108
        %s2111 = sand.u32 %s253, 1
        %s2112 = scalar_lea.sflag [#allocation4], %s2111
        %s2113 = sand.u32 %s253, 1
        %s2114 = smul.addr %s2113, 16
        %s2115 = scalar_lea.vmem [#allocation13], %s2114
        // Predicated region
        $region85: #{tpu_custom_call.1} parent=59 // pred_check
          %p2116 = pneg %p263
        $region86: #{tpu_custom_call.1} parent=59 // pred_check_branch
          %2118 = sbr.rel (%p2116) target = $region88
        $region87: #{tpu_custom_call.1} parent=59 // pred_region
          %s2120 = ssub.s32 256, 256
          %2121 = vsyncadd %s2112, %s2120
          %s2122 = smul.addr %s30, 2
          %s2123 = smul.addr %s2122, 128
          %s2124 = scalar_lea.hbm %s10, %s2123
          %s2125 = sshll.u32 %s2115, 4
          %s2126 = int_to_ptr.vmem [resolvable:$true] %s2125
          %2131 = dma.vmem_to_hbm [thread:$0]  %s2126, 256, %s2124, %s2112, 128, 128, 8
        $region88: #{tpu_custom_call.1} parent=59 // pred_fallthru
          _
      $region60: #{tpu_custom_call.1} parent=5 // pred_fallthru
        _
      %p2132 = scmp.le.s32.totalorder 2, %s25
      // Predicated region
      $region89: #{tpu_custom_call.1} parent=5 // pred_check
        %p2133 = pneg %p2132
      $region90: #{tpu_custom_call.1} parent=5 // pred_check_branch
        %2135 = sbr.rel (%p2133) target = $region92
      $region91: #{tpu_custom_call.1} parent=5 // pred_region
        %s2136 = ssub.s32 %s25, 2
        // Predicated region
        $region93: #{tpu_custom_call.1} parent=91 // pred_check
          %p2137 = pneg %p269
        $region94: #{tpu_custom_call.1} parent=91 // pred_check_branch
          %2139 = sbr.rel (%p2137) target = $region96
        $region95: #{tpu_custom_call.1} parent=91 // pred_region
          %s2140 = sand.u32 %s254, 1
          %s2141 = scalar_lea.sflag [#allocation4], %s2140
          %s2142 = sand.u32 %s254, 1
          %s2143 = smul.addr %s2142, 16
          %s2144 = scalar_lea.vmem [#allocation13], %s2143
          %2145 = dma.done %s2141, 256
        $region96: #{tpu_custom_call.1} parent=91 // pred_fallthru
          _
      $region92: #{tpu_custom_call.1} parent=5 // pred_fallthru
        _
    $region6: #{tpu_custom_call.1} parent=1 // loop_footer
      %s29 = sadd.s32 1, %s25
    $region7: #{tpu_custom_call.1} parent=1 // loop_footer_branch
      %24 = sbr.rel target = $region3
    $region8: #{tpu_custom_call.1} parent=1 // loop_exit
      _
    %2146 = vsyncpa [#allocation3], 1
    %s2147 = scalar_lea.sflag [#allocation3], 1
    %2148 = vsyncpa %s2147, 1
    %2149 = vsyncpa [#allocation6], 1
    %2150 = vsyncpa [#allocation9], 1
    %2151 = vsyncpa [#allocation12], 1
    %2152 = vsyncpa [#allocation4], 1
    %s2153 = scalar_lea.sflag [#allocation4], 1
    %2154 = vsyncpa %s2153, 1

</llo_original>
